<compile_context>
chip_gen: v6e
topology: v6e:2x2x1
jax: 0.10.0
libtpu: 0.0.40
codegen_flags: <defaults>
</compile_context>

<pallas_src>
import functools

import jax
import jax.numpy as jnp
from jax import lax
from jax.experimental import pallas as pl
from jax.experimental.pallas import tpu as pltpu


# ---------------------------------------------------------------------------
# Kernels
# ---------------------------------------------------------------------------

def _tile_costs(im_ref, s_ref, drow_ref, dcol_ref, *, margin, tm, tn, n_valid, masked):
    """Per-tile MXU scores + margin/clamp + diagonal (and padding) masking."""
    i = pl.program_id(0)
    j = pl.program_id(1)

    # MXU: scores[r, c] = <im_row r, s_row c>; contract last dims (no s.T materialized),
    # native operand dtype straight into the MXU with f32 accumulation.
    scores = lax.dot_general(
        im_ref[...], s_ref[...],
        dimension_numbers=(((1,), (1,)), ((), ())),
        preferred_element_type=jnp.float32)                        # (tm, tn) f32

    base = scores + margin                                         # reused by both costs
    cost_s = jnp.maximum(base - drow_ref[...], 0.0)                # (tm,1) broadcast
    cost_im = jnp.maximum(base - dcol_ref[...], 0.0)               # (1,tn) broadcast

    # Clear the global diagonal; with padding also zero rows/cols >= n_valid.
    row_g = i * tm + lax.broadcasted_iota(jnp.int32, (tm, tn), 0)
    col_g = j * tn + lax.broadcasted_iota(jnp.int32, (tm, tn), 1)
    keep = row_g != col_g
    if masked:
        keep = keep & (row_g < n_valid) & (col_g < n_valid)
    cost_s = jnp.where(keep, cost_s, 0.0)
    cost_im = jnp.where(keep, cost_im, 0.0)
    return cost_s, cost_im


def _sum_kernel(im_ref, s_ref, drow_ref, dcol_ref, part_ref, *,
                margin, tm, tn, n_valid, masked):
    """max_violation=False: per-row-block (8, tn) partial sums (VPU adds only per step)."""
    j = pl.program_id(1)
    cost_s, cost_im = _tile_costs(im_ref, s_ref, drow_ref, dcol_ref,
                                  margin=margin, tm=tm, tn=tn,
                                  n_valid=n_valid, masked=masked)
    # Fold tm rows down to 8 sublanes with plain vreg adds (layout-preserving reshape);
    # the cross-lane collapse to a scalar is deferred to the wrapper.
    part = jnp.sum((cost_s + cost_im).reshape(tm // 8, 8, tn), axis=0)   # (8, tn)

    @pl.when(j == 0)
    def _():
        part_ref[...] = part[None]

    @pl.when(j > 0)
    def _():
        part_ref[...] += part[None]


def _max_kernel(im_ref, s_ref, drow_ref, dcol_ref, rowmax_ref, colmax_ref, *,
                margin, tm, tn, n_valid, masked):
    """max_violation=True: hardest negative per row (across j) and per column (per block)."""
    j = pl.program_id(1)
    cost_s, cost_im = _tile_costs(im_ref, s_ref, drow_ref, dcol_ref,
                                  margin=margin, tm=tm, tn=tn,
                                  n_valid=n_valid, masked=masked)

    # Running per-row hardest negative across the column sweep (the output block is
    # resident across j).  First-tile init is only valid because clamped costs are >= 0.
    tile_rmax = jnp.max(cost_s, axis=1, keepdims=True)             # (tm, 1)

    @pl.when(j == 0)
    def _():
        rowmax_ref[...] = tile_rmax

    @pl.when(j > 0)
    def _():
        rowmax_ref[...] = jnp.maximum(rowmax_ref[...], tile_rmax)

    # Per-column hardest negative within this row block; column chunk j written once.
    colmax_ref[...] = jnp.max(cost_im, axis=0, keepdims=True).reshape(1, 1, tn)


# ---------------------------------------------------------------------------
# Tile / VMEM budgeting
# ---------------------------------------------------------------------------

def _tpu_generation():
    try:
        kind = jax.devices()[0].device_kind.lower()
    except Exception:
        return None
    if ("v5 lite" in kind) or ("v5e" in kind) or ("v5lite" in kind):
        return "v5e"
    if "v6" in kind:
        return "v6e"
    if ("v7" in kind) or ("7x" in kind):
        return "v7x"
    return None


def _select_tiles(n_pad, d, itemsize, gen):
    # Physical VMEM per TensorCore: v5e/v6e 128 MiB, v7x 64 MiB (unknown -> conservative).
    if gen in ("v5e", "v6e"):
        phys = 128 << 20
    else:
        phys = 64 << 20

    # v5e MXU is 4x128x128, so 256-wide column tiles buy nothing there.
    if gen == "v5e":
        tn = 128
    else:
        tn = 256 if (n_pad % 256 == 0) else 128
    tn = min(tn, n_pad)

    def usage(tm):
        dbuf_in = 2 * (tm * d + tn * d) * itemsize      # double-buffered im / s blocks
        dbuf_diag = 2 * (tm + tn) * 4                   # double-buffered diag blocks
        temps = 5 * tm * tn * 4                         # scores/base/costs/mask temporaries
        outs = 2 * (tm + 9 * tn) * 4                    # resident / streamed output blocks
        return dbuf_in + dbuf_diag + temps + outs + (1 << 20)

    budget = int(phys * 0.55)
    tm = 128
    for cand in (1024, 512, 256, 128):                  # biggest row block that fits
        if cand <= n_pad and n_pad % cand == 0 and usage(cand) <= budget:
            tm = cand
            break

    vmem_limit = max(32 << 20, 2 * usage(tm))
    vmem_limit = min(vmem_limit, phys - (8 << 20))
    return tm, tn, int(vmem_limit)


# ---------------------------------------------------------------------------
# Wrapper
# ---------------------------------------------------------------------------

def triplet_contrastive_loss(im, s, *, margin=0.2, max_violation=False,
                             compute_dtype=None):
    """Pallas TPU implementation of TripletContrastiveLoss forward (measure='cosine')."""
    assert im.ndim == 2 and im.shape == s.shape, "im and s must both be (N, D)"
    n, d = im.shape

    if compute_dtype is not None:
        # Optional bf16 operands (v6e/v7x): halves HBM traffic on the streamed s input and
        # runs the MXU at full rate; clamp/accumulate math stays f32 inside the kernel.
        im = im.astype(compute_dtype)
        s = s.astype(compute_dtype)

    # Diagonal precomputed once in the wrapper and streamed as two tiny side inputs.
    diag = jnp.sum(im.astype(jnp.float32) * s.astype(jnp.float32), axis=1)   # (N,)

    # Pad N to a multiple of 128 so the tiled grid always applies.
    n_pad = ((n + 127) // 128) * 128
    pad = n_pad - n
    if pad:
        im = jnp.pad(im, ((0, pad), (0, 0)))
        s = jnp.pad(s, ((0, pad), (0, 0)))
        diag = jnp.pad(diag, (0, pad))
    drow = diag.reshape(n_pad, 1)
    dcol = diag.reshape(1, n_pad)

    itemsize = jnp.dtype(im.dtype).itemsize
    tm, tn, vmem_limit = _select_tiles(n_pad, d, itemsize, _tpu_generation())
    gi, gj = n_pad // tm, n_pad // tn

    # TODO(synk): for very large D (>= ~2-4K) add an innermost k grid axis tiling the
    #             contraction dim with a (tm, tn) f32 accumulator instead of loading full D.

    in_specs = [
        pl.BlockSpec((tm, d), lambda i, j: (i, 0)),   # im rows: re-DMA'd only when i changes
        pl.BlockSpec((tn, d), lambda i, j: (j, 0)),   # s rows: streamed once per row block
        pl.BlockSpec((tm, 1), lambda i, j: (i, 0)),   # diag for this row block  (d1)
        pl.BlockSpec((1, tn), lambda i, j: (0, j)),   # diag for this col block  (d2)
    ]
    cost = pl.CostEstimate(
        flops=2 * n_pad * n_pad * d + 10 * n_pad * n_pad,
        transcendentals=0,
        bytes_accessed=(gi * n_pad * d + n_pad * d) * itemsize + (2 * gi + 3) * n_pad * 4,
    )
    compiler_params = pltpu.CompilerParams(
        # i is 'parallel' (megacore shards row blocks across TensorCores on v7x); only the
        # column sweep j carries a resident accumulation and must stay 'arbitrary'.
        dimension_semantics=("parallel", "arbitrary"),
        vmem_limit_bytes=vmem_limit,
    )
    common = dict(margin=float(margin), tm=tm, tn=tn, n_valid=n, masked=bool(pad))

    if max_violation:
        rowmax, colmax = pl.pallas_call(
            functools.partial(_max_kernel, **common),
            out_shape=(
                jax.ShapeDtypeStruct((n_pad, 1), jnp.float32),       # per-row hardest neg
                jax.ShapeDtypeStruct((gi, 1, n_pad), jnp.float32),   # per-row-block col max
            ),
            grid_spec=pltpu.PrefetchScalarGridSpec(
                num_scalar_prefetch=0,
                grid=(gi, gj),
                in_specs=in_specs,
                out_specs=[
                    pl.BlockSpec((tm, 1), lambda i, j: (i, 0)),
                    pl.BlockSpec((1, 1, tn), lambda i, j: (i, 0, j)),
                ],
            ),
            compiler_params=compiler_params,
            cost_estimate=cost,
        )(im, s, drow, dcol)
        # Trivial final reductions over per-row-block partials (padded entries are 0 and
        # all values are clamped >= 0, so they cannot affect the max or the sum).
        return jnp.sum(rowmax) + jnp.sum(jnp.max(colmax, axis=0))

    part = pl.pallas_call(
        functools.partial(_sum_kernel, **common),
        out_shape=jax.ShapeDtypeStruct((gi, 8, tn), jnp.float32),
        grid_spec=pltpu.PrefetchScalarGridSpec(
            num_scalar_prefetch=0,
            grid=(gi, gj),
            in_specs=in_specs,
            out_specs=pl.BlockSpec((1, 8, tn), lambda i, j: (i, 0, 0)),
        ),
        compiler_params=compiler_params,
        cost_estimate=cost,
    )(im, s, drow, dcol)
    return jnp.sum(part)


# ---------------------------------------------------------------------------
# Reference + smoke test
# ---------------------------------------------------------------------------

def _reference_loss(im, s, margin=0.2, max_violation=False):
    """Pure-JAX reference matching the PyTorch module (cosine branch)."""
    scores = im @ s.T
    diag = jnp.diag(scores)
    d1 = diag[:, None]
    d2 = diag[None, :]
    cost_s = jnp.maximum(margin + scores - d1, 0.0)
    cost_im = jnp.maximum(margin + scores - d2, 0.0)
    eye = jnp.eye(scores.shape[0], dtype=bool)
    cost_s = jnp.where(eye, 0.0, cost_s)
    cost_im = jnp.where(eye, 0.0, cost_im)
    if max_violation:
        cost_s = cost_s.max(axis=1)
        cost_im = cost_im.max(axis=0)
    return cost_s.sum() + cost_im.sum()


if __name__ == "__main__":
    key = jax.random.PRNGKey(0)
    k_im, k_s = jax.random.split(key)
    margin = 0.2
    ok = True

    # (512,128): multi-block grid; (200,96): padding + masking path; (8,32): tiny case.
    for (N, D) in ((512, 128), (200, 96), (8, 32)):
        im = jax.random.normal(k_im, (N, D), dtype=jnp.float32)
        s = jax.random.normal(k_s, (N, D), dtype=jnp.float32)
        # cosine_sim in the original code assumes pre-normalized embeddings; the kernel
        # itself matches im.mm(s.t()) exactly, normalized or not.
        im = im / jnp.linalg.norm(im, axis=1, keepdims=True)
        s = s / jnp.linalg.norm(s, axis=1, keepdims=True)

        for max_violation in (False, True):
            loss = triplet_contrastive_loss(
                im, s, margin=margin, max_violation=max_violation)
            loss = jax.block_until_ready(loss)
            ref = _reference_loss(im, s, margin=margin, max_violation=max_violation)
            if not jnp.allclose(loss, ref, rtol=1e-4, atol=1e-4):
                ok = False

    if ok:
        print("KERNEL_OK")
</pallas_src>

<mosaic_0001>
module attributes {stable_mosaic.version = 11 : i64} {
  func.func @_sum_kernel(%arg0: i32, %arg1: i32, %arg2: memref<512x128xf32, #tpu.memory_space<vmem>>, %arg3: memref<256x128xf32, #tpu.memory_space<vmem>>, %arg4: memref<512x1xf32, #tpu.memory_space<vmem>>, %arg5: memref<1x256xf32, #tpu.memory_space<vmem>>, %arg6: memref<1x8x256xf32, #tpu.memory_space<vmem>>) attributes {dimension_semantics = [#tpu.dimension_semantics<parallel>, #tpu.dimension_semantics<arbitrary>], iteration_bounds = array<i64: 1, 2>, scalar_prefetch = 0 : i64, scratch_operands = 0 : i64, tpu.core_type = #tpu.core_type<tc>, window_params = [{transform_indices = @transform_0, window_bounds = array<i64: 512, 128>}, {transform_indices = @transform_1, window_bounds = array<i64: 256, 128>}, {transform_indices = @transform_2, window_bounds = array<i64: 512, 1>}, {transform_indices = @transform_3, window_bounds = array<i64: 1, 256>}, {transform_indices = @transform_4, window_bounds = array<i64: 1, 8, 256>}]} {
    %c0 = arith.constant 0 : index
    %c0_0 = arith.constant 0 : index
    %0 = vector.load %arg2[%c0, %c0_0] : memref<512x128xf32, #tpu.memory_space<vmem>>, vector<512x128xf32>
    %c0_1 = arith.constant 0 : index
    %c0_2 = arith.constant 0 : index
    %1 = vector.load %arg3[%c0_1, %c0_2] : memref<256x128xf32, #tpu.memory_space<vmem>>, vector<256x128xf32>
    %cst = arith.constant dense<0.000000e+00> : vector<512x256xf32>
    %2 = tpu.matmul %0, %1, %cst {dimension_numbers = #tpu.dot_dimension_numbers<[1], [1], [0], [0], [0, 0, 1, 0], [], []>} : vector<512x128xf32>, vector<256x128xf32>, vector<512x256xf32> -> vector<512x256xf32>
    %cst_3 = arith.constant 2.000000e-01 : f32
    %3 = vector.broadcast %cst_3 : f32 to vector<512x256xf32>
    %4 = arith.addf %2, %3 : vector<512x256xf32>
    %c0_4 = arith.constant 0 : index
    %c0_5 = arith.constant 0 : index
    %5 = vector.load %arg4[%c0_4, %c0_5] : memref<512x1xf32, #tpu.memory_space<vmem>>, vector<512x1xf32>
    %6 = vector.broadcast %5 : vector<512x1xf32> to vector<512x256xf32>
    %7 = arith.subf %4, %6 : vector<512x256xf32>
    %cst_6 = arith.constant 0.000000e+00 : f32
    %8 = vector.broadcast %cst_6 : f32 to vector<512x256xf32>
    %9 = arith.maximumf %7, %8 : vector<512x256xf32>
    %c0_7 = arith.constant 0 : index
    %c0_8 = arith.constant 0 : index
    %10 = vector.load %arg5[%c0_7, %c0_8] : memref<1x256xf32, #tpu.memory_space<vmem>>, vector<1x256xf32>
    %11 = vector.broadcast %10 : vector<1x256xf32> to vector<512x256xf32>
    %12 = arith.subf %4, %11 : vector<512x256xf32>
    %cst_9 = arith.constant 0.000000e+00 : f32
    %13 = vector.broadcast %cst_9 : f32 to vector<512x256xf32>
    %14 = arith.maximumf %12, %13 : vector<512x256xf32>
    %c512_i32 = arith.constant 512 : i32
    %15 = arith.muli %arg0, %c512_i32 : i32
    %16 = tpu.iota {dimensions = array<i32: 0>} : vector<512x256xi32>
    %17 = vector.broadcast %15 : i32 to vector<512x256xi32>
    %18 = arith.addi %17, %16 : vector<512x256xi32>
    %c256_i32 = arith.constant 256 : i32
    %19 = arith.muli %arg1, %c256_i32 : i32
    %20 = tpu.iota {dimensions = array<i32: 1>} : vector<512x256xi32>
    %21 = vector.broadcast %19 : i32 to vector<512x256xi32>
    %22 = arith.addi %21, %20 : vector<512x256xi32>
    %23 = arith.cmpi ne, %18, %22 : vector<512x256xi32>
    %cst_10 = arith.constant 0.000000e+00 : f32
    %24 = vector.broadcast %cst_10 : f32 to vector<512x256xf32>
    %25 = arith.select %23, %9, %24 : vector<512x256xi1>, vector<512x256xf32>
    %cst_11 = arith.constant 0.000000e+00 : f32
    %26 = vector.broadcast %cst_11 : f32 to vector<512x256xf32>
    %27 = arith.select %23, %14, %26 : vector<512x256xi1>, vector<512x256xf32>
    %28 = arith.addf %25, %27 : vector<512x256xf32>
    %29 = vector.shape_cast %28 : vector<512x256xf32> to vector<64x8x256xf32>
    %cst_12 = arith.constant dense<0.000000e+00> : vector<8x256xf32>
    %30 = vector.multi_reduction <add>, %29, %cst_12 [0] : vector<64x8x256xf32> to vector<8x256xf32>
    %c0_i32 = arith.constant 0 : i32
    %31 = arith.cmpi eq, %arg1, %c0_i32 : i32
    %32 = arith.extui %31 : i1 to i32
    %c0_i32_13 = arith.constant 0 : i32
    %33 = arith.cmpi ne, %32, %c0_i32_13 : i32
    scf.if %33 {
      %37 = vector.shape_cast %30 : vector<8x256xf32> to vector<1x8x256xf32>
      %c0_16 = arith.constant 0 : index
      %c0_17 = arith.constant 0 : index
      %c0_18 = arith.constant 0 : index
      %38 = vector.load %arg6[%c0_16, %c0_17, %c0_18] : memref<1x8x256xf32, #tpu.memory_space<vmem>>, vector<1x8x256xf32>
      tpu.vector_store %arg6[%c0_16, %c0_17, %c0_18], %37 {strides = array<i32>} : memref<1x8x256xf32, #tpu.memory_space<vmem>>, vector<1x8x256xf32>,
    } else {
    }
    %c0_i32_14 = arith.constant 0 : i32
    %34 = arith.cmpi sgt, %arg1, %c0_i32_14 : i32
    %35 = arith.extui %34 : i1 to i32
    %c0_i32_15 = arith.constant 0 : i32
    %36 = arith.cmpi ne, %35, %c0_i32_15 : i32
    scf.if %36 {
      %c0_16 = arith.constant 0 : index
      %c0_17 = arith.constant 0 : index
      %c0_18 = arith.constant 0 : index
      %37 = vector.load %arg6[%c0_16, %c0_17, %c0_18] : memref<1x8x256xf32, #tpu.memory_space<vmem>>, vector<1x8x256xf32>
      %38 = vector.shape_cast %30 : vector<8x256xf32> to vector<1x8x256xf32>
      %39 = arith.addf %37, %38 : vector<1x8x256xf32>
      %c0_19 = arith.constant 0 : index
      %c0_20 = arith.constant 0 : index
      %c0_21 = arith.constant 0 : index
      %40 = vector.load %arg6[%c0_19, %c0_20, %c0_21] : memref<1x8x256xf32, #tpu.memory_space<vmem>>, vector<1x8x256xf32>
      tpu.vector_store %arg6[%c0_19, %c0_20, %c0_21], %39 {strides = array<i32>} : memref<1x8x256xf32, #tpu.memory_space<vmem>>, vector<1x8x256xf32>,
    } else {
    }
    return
  }
  func.func @transform_0(%arg0: i32, %arg1: i32) -> (i32, i32) {
    %c0_i32 = arith.constant 0 : i32
    %c0_i32_0 = arith.constant 0 : i32
    return %arg0, %c0_i32 : i32, i32
  }
  func.func @transform_1(%arg0: i32, %arg1: i32) -> (i32, i32) {
    %c0_i32 = arith.constant 0 : i32
    %c0_i32_0 = arith.constant 0 : i32
    return %arg1, %c0_i32 : i32, i32
  }
  func.func @transform_2(%arg0: i32, %arg1: i32) -> (i32, i32) {
    %c0_i32 = arith.constant 0 : i32
    %c0_i32_0 = arith.constant 0 : i32
    return %arg0, %c0_i32 : i32, i32
  }
  func.func @transform_3(%arg0: i32, %arg1: i32) -> (i32, i32) {
    %c0_i32 = arith.constant 0 : i32
    %c0_i32_0 = arith.constant 0 : i32
    return %c0_i32, %arg1 : i32, i32
  }
  func.func @transform_4(%arg0: i32, %arg1: i32) -> (i32, i32, i32) {
    %c0_i32 = arith.constant 0 : i32
    %c0_i32_0 = arith.constant 0 : i32
    %c0_i32_1 = arith.constant 0 : i32
    return %arg0, %c0_i32, %c0_i32_0 : i32, i32, i32
  }
}

</mosaic_0001>

<llo_original>
// kernel: tpu_custom_call.1
$region0: #{tpu_custom_call.1}
  #allocation0 [shape = 'u32[]', space=smem, size = 0x4, offset = 0x4, fixed_abs, tag = 'smem constant byte address 0x4 - core index']
  #allocation1 [shape = 'u32[144,128]{1,0:T(1,128)}', space=vmem, size = 0x12000, scoped, tag = 'internal scratch']
  %s0 = inlined_call_operand.vmem [shape: f32[512,128], index: 0, kind: input, shape index: {}]
  %s1 = inlined_call_operand.hbm [shape: f32[512,128], index: 1, kind: input, shape index: {}]
  %s2 = inlined_call_operand.vmem [shape: f32[512,1], index: 2, kind: input, shape index: {}]
  %s3 = inlined_call_operand.vmem [shape: f32[1,512], index: 3, kind: input, shape index: {}]
  %s4 = inlined_call_operand.hbm [shape: f32[1,8,256], index: 4, kind: output, shape index: {}]
  %s5 = sld [smem:[#allocation0]]
  $region61: #{tpu_custom_call.1} parent=0
    _
  %s7 = ssub.s32 1, %s5
  %s8 = scalar_select 0, %s7, %s5
  $region1: #{tpu_custom_call.1} parent=0
    #allocation2 [shape = 'u8[262144]{0}', space=vmem, size = 0x40000, scoped, tag = 'input window, operand 1']
    #allocation3 [shape = 's32[2]{0}', space=sflag, size = 0x8, scoped, tag = 'scoped memory for tpu_custom_call.1']
    #allocation4 [shape = 's32[2]{0}', space=sflag, size = 0x8, scoped, tag = 'scoped memory for tpu_custom_call.1']
    #allocation5 [shape = 'u8[8192]{0}', space=vmem, size = 0x2000, scoped, tag = 'output window, operand 0, single buffered']
    %9 = vsyncpa [#allocation3], 0
    %s10 = scalar_lea.sflag [#allocation3], 1
    %11 = vsyncpa %s10, 0
    %12 = vsyncpa [#allocation4], 0
    loop: start=0, step=1, limit=4
    $region2: #{tpu_custom_call.1} parent=1 // loop_pre_header
      _
    $region3: #{tpu_custom_call.1} parent=1 // loop_header
      %s14 = sphi 0, %s18
      %p15 = scmp.ge.s32.totalorder %s14, 4
      %s21 = sphi 0, %s33
      %s22 = sphi 0, %s29
      %s23 = sphi 0, %s21
      %s24 = sphi 0, %s22
      %s25 = sphi 0, %s23
      %s26 = sphi 0, %s24
      %s36 = sphi 0, %s38
      %s39 = sphi 0, %s36
      %s40 = sphi 0, %s39
      %s56 = sphi 0, %s40
      %s62 = sphi 0, %s64
      %s65 = sphi 0, %s62
      %s66 = sphi 0, %s65
      %s82 = sphi 0, %s66
      %s88 = sphi 0, %s90
      %s91 = sphi 0, %s88
      %s92 = sphi 0, %s91
      %s108 = sphi 0, %s92
      %s114 = sphi 0, %s116
      %s117 = sphi 0, %s114
      %s118 = sphi 0, %s117
      %s134 = sphi 0, %s118
      %s140 = sphi 0, %s142
      %s143 = sphi 0, %s140
      %s144 = sphi 0, %s143
      %s160 = sphi 0, %s144
    $region4: #{tpu_custom_call.1} parent=1 // loop_header_branch
      %17 = sbr.rel (%p15) target = $region8
    $region5: #{tpu_custom_call.1} parent=1 // loop_body
      %s19 = ssub.s32 %s14, 1
      %s20 = ssub.s32 %s14, 2
      %s27 = sadd.s32 1, %s22
      %p28 = scmp.ge.s32.totalorder %s27, 2
      %s29 = scalar_select %p28, 0, %s27
      %s30 = sadd.s32 1, %s21
      %s31 = scalar_select %p28, %s30, %s21
      %p32 = scmp.ge.s32.totalorder %s31, 1
      %s33 = scalar_select %p32, 0, %s31
      %s34 = ssub.s32 %s21, %s33
      %p35 = scmp.eq.s32.totalorder %s34, 0
      %s37 = sadd.s32 %s36, 1
      %s38 = scalar_select %p35, %s36, %s37
      %p41 = pneg %p35
      %p42 = scmp.eq.s32.totalorder %s14, 1
      %p43 = por %p41, %p42
      %p44 = scmp.ne.s32.totalorder %s36, %s39
      %p45 = scmp.eq.s32.totalorder %s14, 0
      %p46 = por %p44, %p45
      %p47 = scmp.ne.s32.totalorder %s36, %s39
      %p48 = scmp.eq.s32.totalorder %s19, 1
      %p49 = por %p47, %p48
      %p50 = scmp.ne.s32.totalorder %s39, %s40
      %p51 = scmp.eq.s32.totalorder %s19, 0
      %p52 = por %p50, %p51
      %p53 = scmp.ne.s32.totalorder %s39, %s40
      %p54 = scmp.eq.s32.totalorder %s20, 1
      %p55 = por %p53, %p54
      %p57 = scmp.ne.s32.totalorder %s40, %s56
      %p58 = scmp.eq.s32.totalorder %s20, 0
      %p59 = por %p57, %p58
      %s60 = ssub.s32 %s22, %s29
      %p61 = scmp.eq.s32.totalorder %s60, 0
      %s63 = sadd.s32 %s62, 1
      %s64 = scalar_select %p61, %s62, %s63
      %p67 = pneg %p61
      %p68 = scmp.eq.s32.totalorder %s14, 1
      %p69 = por %p67, %p68
      %p70 = scmp.ne.s32.totalorder %s62, %s65
      %p71 = scmp.eq.s32.totalorder %s14, 0
      %p72 = por %p70, %p71
      %p73 = scmp.ne.s32.totalorder %s62, %s65
      %p74 = scmp.eq.s32.totalorder %s19, 1
      %p75 = por %p73, %p74
      %p76 = scmp.ne.s32.totalorder %s65, %s66
      %p77 = scmp.eq.s32.totalorder %s19, 0
      %p78 = por %p76, %p77
      %p79 = scmp.ne.s32.totalorder %s65, %s66
      %p80 = scmp.eq.s32.totalorder %s20, 1
      %p81 = por %p79, %p80
      %p83 = scmp.ne.s32.totalorder %s66, %s82
      %p84 = scmp.eq.s32.totalorder %s20, 0
      %p85 = por %p83, %p84
      %s86 = ssub.s32 %s21, %s33
      %p87 = scmp.eq.s32.totalorder %s86, 0
      %s89 = sadd.s32 %s88, 1
      %s90 = scalar_select %p87, %s88, %s89
      %p93 = pneg %p87
      %p94 = scmp.eq.s32.totalorder %s14, 1
      %p95 = por %p93, %p94
      %p96 = scmp.ne.s32.totalorder %s88, %s91
      %p97 = scmp.eq.s32.totalorder %s14, 0
      %p98 = por %p96, %p97
      %p99 = scmp.ne.s32.totalorder %s88, %s91
      %p100 = scmp.eq.s32.totalorder %s19, 1
      %p101 = por %p99, %p100
      %p102 = scmp.ne.s32.totalorder %s91, %s92
      %p103 = scmp.eq.s32.totalorder %s19, 0
      %p104 = por %p102, %p103
      %p105 = scmp.ne.s32.totalorder %s91, %s92
      %p106 = scmp.eq.s32.totalorder %s20, 1
      %p107 = por %p105, %p106
      %p109 = scmp.ne.s32.totalorder %s92, %s108
      %p110 = scmp.eq.s32.totalorder %s20, 0
      %p111 = por %p109, %p110
      %s112 = ssub.s32 %s22, %s29
      %p113 = scmp.eq.s32.totalorder %s112, 0
      %s115 = sadd.s32 %s114, 1
      %s116 = scalar_select %p113, %s114, %s115
      %p119 = pneg %p113
      %p120 = scmp.eq.s32.totalorder %s14, 1
      %p121 = por %p119, %p120
      %p122 = scmp.ne.s32.totalorder %s114, %s117
      %p123 = scmp.eq.s32.totalorder %s14, 0
      %p124 = por %p122, %p123
      %p125 = scmp.ne.s32.totalorder %s114, %s117
      %p126 = scmp.eq.s32.totalorder %s19, 1
      %p127 = por %p125, %p126
      %p128 = scmp.ne.s32.totalorder %s117, %s118
      %p129 = scmp.eq.s32.totalorder %s19, 0
      %p130 = por %p128, %p129
      %p131 = scmp.ne.s32.totalorder %s117, %s118
      %p132 = scmp.eq.s32.totalorder %s20, 1
      %p133 = por %p131, %p132
      %p135 = scmp.ne.s32.totalorder %s118, %s134
      %p136 = scmp.eq.s32.totalorder %s20, 0
      %p137 = por %p135, %p136
      %s138 = ssub.s32 %s21, %s33
      %p139 = scmp.eq.s32.totalorder %s138, 0
      %s141 = sadd.s32 %s140, 1
      %s142 = scalar_select %p139, %s140, %s141
      %p145 = pneg %p139
      %p146 = scmp.eq.s32.totalorder %s14, 1
      %p147 = por %p145, %p146
      %p148 = scmp.ne.s32.totalorder %s140, %s143
      %p149 = scmp.eq.s32.totalorder %s14, 0
      %p150 = por %p148, %p149
      %p151 = scmp.ne.s32.totalorder %s140, %s143
      %p152 = scmp.eq.s32.totalorder %s19, 1
      %p153 = por %p151, %p152
      %p154 = scmp.ne.s32.totalorder %s143, %s144
      %p155 = scmp.eq.s32.totalorder %s19, 0
      %p156 = por %p154, %p155
      %p157 = scmp.ne.s32.totalorder %s143, %s144
      %p158 = scmp.eq.s32.totalorder %s20, 1
      %p159 = por %p157, %p158
      %p161 = scmp.ne.s32.totalorder %s144, %s160
      %p162 = scmp.eq.s32.totalorder %s20, 0
      %p163 = por %p161, %p162
      %p164 = scmp.le.s32.totalorder 1, %s14
      %p165 = scmp.lt.s32.totalorder %s14, 3
      %p166 = pnand %p164, %p165
      %p167 = pneg %p166
      // Predicated region
      $region9: #{tpu_custom_call.1} parent=5 // pred_check
        _
      $region10: #{tpu_custom_call.1} parent=5 // pred_check_branch
        %169 = sbr.rel (%p166) target = $region12
      $region11: #{tpu_custom_call.1} parent=5 // pred_region
        %s170 = ssub.s32 %s14, 1
        // Predicated region
        $region13: #{tpu_custom_call.1} parent=11 // pred_check
          %p171 = pneg %p52
        $region14: #{tpu_custom_call.1} parent=11 // pred_check_branch
          %173 = sbr.rel (%p171) target = $region16
        $region15: #{tpu_custom_call.1} parent=11 // pred_region
          %s174 = smul.u32 64, %s23
          %p175 = scmp.lt.s32.totalorder %s174, 63
          %s176 = scalar_select %p175, %s174, 63
          %s177 = smul.addr %s176, 8
          %s178 = scalar_lea.vmem %s0, %s177
          %s179 = smul.u32 64, %s23
        $region16: #{tpu_custom_call.1} parent=11 // pred_fallthru
          _
        // Predicated region
        $region17: #{tpu_custom_call.1} parent=11 // pred_check
          %p180 = pneg %p104
        $region18: #{tpu_custom_call.1} parent=11 // pred_check_branch
          %182 = sbr.rel (%p180) target = $region20
        $region19: #{tpu_custom_call.1} parent=11 // pred_region
          %s183 = smul.u32 64, %s23
          %p184 = scmp.lt.s32.totalorder %s183, 63
          %s185 = scalar_select %p184, %s183, 63
          %s186 = smul.addr %s185, 8
          %s187 = scalar_lea.vmem %s2, %s186
          %s188 = smul.u32 64, %s23
        $region20: #{tpu_custom_call.1} parent=11 // pred_fallthru
          _
      $region12: #{tpu_custom_call.1} parent=5 // pred_fallthru
        _
      %p189 = scmp.lt.s32.totalorder %s14, 2
      // Predicated region
      $region21: #{tpu_custom_call.1} parent=5 // pred_check
        %p190 = pneg %p189
      $region22: #{tpu_custom_call.1} parent=5 // pred_check_branch
        %192 = sbr.rel (%p190) target = $region24
      $region23: #{tpu_custom_call.1} parent=5 // pred_region
        // Predicated region
        $region25: #{tpu_custom_call.1} parent=23 // pred_check
          %p193 = pneg %p72
        $region26: #{tpu_custom_call.1} parent=23 // pred_check_branch
          %195 = sbr.rel (%p193) target = $region28
        $region27: #{tpu_custom_call.1} parent=23 // pred_region
          %s196 = sand.u32 %s62, 1
          %s197 = scalar_lea.sflag [#allocation3], %s196
          %s198 = sand.u32 %s62, 1
          %s199 = smul.addr %s198, 256
          %s200 = scalar_lea.vmem [#allocation2], %s199
          %s201 = smul.u32 32, %s22
          %s203 = ssub.s32 4096, 4096
          %204 = vsyncadd %s197, %s203
          %s205 = smul.addr %s201, 128
          %s206 = scalar_lea.hbm %s1, %s205
          %s207 = sshll.u32 %s200, 4
          %s208 = int_to_ptr.vmem [resolvable:$true] %s207
          %213 = dma.hbm_to_vmem [thread:$0]  %s206, 4096, %s208, %s197, 128, 128, 8
        $region28: #{tpu_custom_call.1} parent=23 // pred_fallthru
          _
        // Predicated region
        $region29: #{tpu_custom_call.1} parent=23 // pred_check
          %p214 = pneg %p124
        $region30: #{tpu_custom_call.1} parent=23 // pred_check_branch
          %216 = sbr.rel (%p214) target = $region32
        $region31: #{tpu_custom_call.1} parent=23 // pred_region
          %s217 = smul.u32 2, %s22
          %p218 = scmp.lt.s32.totalorder %s217, 3
          %s219 = scalar_select %p218, %s217, 3
          %s220 = scalar_lea.vmem %s3, %s219
          %s221 = smul.u32 2, %s22
        $region32: #{tpu_custom_call.1} parent=23 // pred_fallthru
          _
      $region24: #{tpu_custom_call.1} parent=5 // pred_fallthru
        _
      %p222 = scmp.le.s32.totalorder 1, %s14
      %p223 = scmp.lt.s32.totalorder %s14, 3
      %p224 = pnand %p222, %p223
      %p225 = pneg %p224
      // Predicated region
      $region33: #{tpu_custom_call.1} parent=5 // pred_check
        _
      $region34: #{tpu_custom_call.1} parent=5 // pred_check_branch
        %227 = sbr.rel (%p224) target = $region36
      $region35: #{tpu_custom_call.1} parent=5 // pred_region
        %s228 = ssub.s32 %s14, 1
        %s229 = sand.u32 %s65, 1
        %s230 = scalar_lea.sflag [#allocation3], %s229
        %s231 = sand.u32 %s65, 1
        %s232 = smul.addr %s231, 256
        %s233 = scalar_lea.vmem [#allocation2], %s232
        // Predicated region
        $region37: #{tpu_custom_call.1} parent=35 // pred_check
          %p234 = pneg %p78
        $region38: #{tpu_custom_call.1} parent=35 // pred_check_branch
          %236 = sbr.rel (%p234) target = $region40
        $region39: #{tpu_custom_call.1} parent=35 // pred_region
          %237 = dma.done %s230, 4096
        $region40: #{tpu_custom_call.1} parent=35 // pred_fallthru
          _
        %s238 = smul.u32 64, %s23
        %p239 = scmp.lt.s32.totalorder %s238, 63
        %s240 = scalar_select %p239, %s238, 63
        %s241 = smul.addr %s240, 8
        %s242 = scalar_lea.vmem %s0, %s241
        %p243 = pneg %p52
        %p244 = pneg %p49
        %s245 = sand.u32 %s65, 1
        %s246 = scalar_lea.sflag [#allocation3], %s245
        %s247 = sand.u32 %s65, 1
        %s248 = smul.addr %s247, 256
        %s249 = scalar_lea.vmem [#allocation2], %s248
        %p250 = pneg %p78
        %p251 = pneg %p75
        %s252 = smul.u32 64, %s23
        %p253 = scmp.lt.s32.totalorder %s252, 63
        %s254 = scalar_select %p253, %s252, 63
        %s255 = smul.addr %s254, 8
        %s256 = scalar_lea.vmem %s2, %s255
        %p257 = pneg %p104
        %p258 = pneg %p101
        %s259 = smul.u32 2, %s24
        %p260 = scmp.lt.s32.totalorder %s259, 3
        %s261 = scalar_select %p260, %s259, 3
        %s262 = scalar_lea.vmem %s3, %s261
        %p263 = pneg %p130
        %p264 = pneg %p127
        %p265 = pneg %p156
        %p266 = pneg %p153
        %s267 = smul.u32 64, %s23
        %p268 = scmp.lt.s32.totalorder %s267, 63
        %s269 = scalar_select %p268, %s267, 63
        %s270 = smul.addr %s269, 8
        %s271 = scalar_lea.vmem %s0, %s270
        %s272 = smul.u32 64, %s23
        %s273 = smul.u32 32, %s24
        %s274 = smul.u32 64, %s23
        %p275 = scmp.lt.s32.totalorder %s274, 63
        %s276 = scalar_select %p275, %s274, 63
        %s277 = smul.addr %s276, 8
        %s278 = scalar_lea.vmem %s2, %s277
        %s279 = smul.u32 64, %s23
        %s280 = smul.u32 2, %s24
        %p281 = scmp.lt.s32.totalorder %s280, 3
        %s282 = scalar_select %p281, %s280, 3
        %s283 = scalar_lea.vmem %s3, %s282
        %s284 = smul.u32 2, %s24
        %v285 = vld [vmem:[%s271] sm:$0xff]
        %v286 = vld [vmem:[%s271 + $0x8] sm:$0xff]
        %v287 = vld [vmem:[%s271 + $0x10] sm:$0xff]
        %v288 = vld [vmem:[%s271 + $0x18] sm:$0xff]
        %v289 = vld [vmem:[%s271 + $0x20] sm:$0xff]
        %v290 = vld [vmem:[%s271 + $0x28] sm:$0xff]
        %v291 = vld [vmem:[%s271 + $0x30] sm:$0xff]
        %v292 = vld [vmem:[%s271 + $0x38] sm:$0xff]
        %v293 = vld [vmem:[%s271 + $0x40] sm:$0xff]
        %v294 = vld [vmem:[%s271 + $0x48] sm:$0xff]
        %v295 = vld [vmem:[%s271 + $0x50] sm:$0xff]
        %v296 = vld [vmem:[%s271 + $0x58] sm:$0xff]
        %v297 = vld [vmem:[%s271 + $0x60] sm:$0xff]
        %v298 = vld [vmem:[%s271 + $0x68] sm:$0xff]
        %v299 = vld [vmem:[%s271 + $0x70] sm:$0xff]
        %v300 = vld [vmem:[%s271 + $0x78] sm:$0xff]
        %v301 = vld [vmem:[%s271 + $0x80] sm:$0xff]
        %v302 = vld [vmem:[%s271 + $0x88] sm:$0xff]
        %v303 = vld [vmem:[%s271 + $0x90] sm:$0xff]
        %v304 = vld [vmem:[%s271 + $0x98] sm:$0xff]
        %v305 = vld [vmem:[%s271 + $0xa0] sm:$0xff]
        %v306 = vld [vmem:[%s271 + $0xa8] sm:$0xff]
        %v307 = vld [vmem:[%s271 + $0xb0] sm:$0xff]
        %v308 = vld [vmem:[%s271 + $0xb8] sm:$0xff]
        %v309 = vld [vmem:[%s271 + $0xc0] sm:$0xff]
        %v310 = vld [vmem:[%s271 + $0xc8] sm:$0xff]
        %v311 = vld [vmem:[%s271 + $0xd0] sm:$0xff]
        %v312 = vld [vmem:[%s271 + $0xd8] sm:$0xff]
        %v313 = vld [vmem:[%s271 + $0xe0] sm:$0xff]
        %v314 = vld [vmem:[%s271 + $0xe8] sm:$0xff]
        %v315 = vld [vmem:[%s271 + $0xf0] sm:$0xff]
        %v316 = vld [vmem:[%s271 + $0xf8] sm:$0xff]
        %v317 = vld [vmem:[%s271 + $0x100] sm:$0xff]
        %v318 = vld [vmem:[%s271 + $0x108] sm:$0xff]
        %v319 = vld [vmem:[%s271 + $0x110] sm:$0xff]
        %v320 = vld [vmem:[%s271 + $0x118] sm:$0xff]
        %v321 = vld [vmem:[%s271 + $0x120] sm:$0xff]
        %v322 = vld [vmem:[%s271 + $0x128] sm:$0xff]
        %v323 = vld [vmem:[%s271 + $0x130] sm:$0xff]
        %v324 = vld [vmem:[%s271 + $0x138] sm:$0xff]
        %v325 = vld [vmem:[%s271 + $0x140] sm:$0xff]
        %v326 = vld [vmem:[%s271 + $0x148] sm:$0xff]
        %v327 = vld [vmem:[%s271 + $0x150] sm:$0xff]
        %v328 = vld [vmem:[%s271 + $0x158] sm:$0xff]
        %v329 = vld [vmem:[%s271 + $0x160] sm:$0xff]
        %v330 = vld [vmem:[%s271 + $0x168] sm:$0xff]
        %v331 = vld [vmem:[%s271 + $0x170] sm:$0xff]
        %v332 = vld [vmem:[%s271 + $0x178] sm:$0xff]
        %v333 = vld [vmem:[%s271 + $0x180] sm:$0xff]
        %v334 = vld [vmem:[%s271 + $0x188] sm:$0xff]
        %v335 = vld [vmem:[%s271 + $0x190] sm:$0xff]
        %v336 = vld [vmem:[%s271 + $0x198] sm:$0xff]
        %v337 = vld [vmem:[%s271 + $0x1a0] sm:$0xff]
        %v338 = vld [vmem:[%s271 + $0x1a8] sm:$0xff]
        %v339 = vld [vmem:[%s271 + $0x1b0] sm:$0xff]
        %v340 = vld [vmem:[%s271 + $0x1b8] sm:$0xff]
        %v341 = vld [vmem:[%s271 + $0x1c0] sm:$0xff]
        %v342 = vld [vmem:[%s271 + $0x1c8] sm:$0xff]
        %v343 = vld [vmem:[%s271 + $0x1d0] sm:$0xff]
        %v344 = vld [vmem:[%s271 + $0x1d8] sm:$0xff]
        %v345 = vld [vmem:[%s271 + $0x1e0] sm:$0xff]
        %v346 = vld [vmem:[%s271 + $0x1e8] sm:$0xff]
        %v347 = vld [vmem:[%s271 + $0x1f0] sm:$0xff]
        %v348 = vld [vmem:[%s271 + $0x1f8] sm:$0xff]
        %v349 = vld [vmem:[%s233] sm:$0xff]
        %v350 = vld [vmem:[%s233 + $0x8] sm:$0xff]
        %v351 = vld [vmem:[%s233 + $0x10] sm:$0xff]
        %v352 = vld [vmem:[%s233 + $0x18] sm:$0xff]
        %v353 = vld [vmem:[%s233 + $0x20] sm:$0xff]
        %v354 = vld [vmem:[%s233 + $0x28] sm:$0xff]
        %v355 = vld [vmem:[%s233 + $0x30] sm:$0xff]
        %v356 = vld [vmem:[%s233 + $0x38] sm:$0xff]
        %v357 = vld [vmem:[%s233 + $0x40] sm:$0xff]
        %v358 = vld [vmem:[%s233 + $0x48] sm:$0xff]
        %v359 = vld [vmem:[%s233 + $0x50] sm:$0xff]
        %v360 = vld [vmem:[%s233 + $0x58] sm:$0xff]
        %v361 = vld [vmem:[%s233 + $0x60] sm:$0xff]
        %v362 = vld [vmem:[%s233 + $0x68] sm:$0xff]
        %v363 = vld [vmem:[%s233 + $0x70] sm:$0xff]
        %v364 = vld [vmem:[%s233 + $0x78] sm:$0xff]
        %v365 = vld [vmem:[%s233 + $0x80] sm:$0xff]
        %v366 = vld [vmem:[%s233 + $0x88] sm:$0xff]
        %v367 = vld [vmem:[%s233 + $0x90] sm:$0xff]
        %v368 = vld [vmem:[%s233 + $0x98] sm:$0xff]
        %v369 = vld [vmem:[%s233 + $0xa0] sm:$0xff]
        %v370 = vld [vmem:[%s233 + $0xa8] sm:$0xff]
        %v371 = vld [vmem:[%s233 + $0xb0] sm:$0xff]
        %v372 = vld [vmem:[%s233 + $0xb8] sm:$0xff]
        %v373 = vld [vmem:[%s233 + $0xc0] sm:$0xff]
        %v374 = vld [vmem:[%s233 + $0xc8] sm:$0xff]
        %v375 = vld [vmem:[%s233 + $0xd0] sm:$0xff]
        %v376 = vld [vmem:[%s233 + $0xd8] sm:$0xff]
        %v377 = vld [vmem:[%s233 + $0xe0] sm:$0xff]
        %v378 = vld [vmem:[%s233 + $0xe8] sm:$0xff]
        %v379 = vld [vmem:[%s233 + $0xf0] sm:$0xff]
        %v380 = vld [vmem:[%s233 + $0xf8] sm:$0xff]
        %381 = vmatprep.subr.mxu0 0.0
        %382 = vmatpush1.xpose.msra.mxu0 %v364
        %383 = vmatprep.subr.mxu0 0.0
        %384 = vmatpush1.xpose.msra.mxu0 %v363
        %385 = vmatprep.subr.mxu0 0.0
        %386 = vmatpush1.xpose.msra.mxu0 %v362
        %387 = vmatprep.subr.mxu0 0.0
        %388 = vmatpush1.xpose.msra.mxu0 %v361
        %389 = vmatprep.subr.mxu0 0.0
        %390 = vmatpush1.xpose.msra.mxu0 %v360
        %391 = vmatprep.subr.mxu0 0.0
        %392 = vmatpush1.xpose.msra.mxu0 %v359
        %393 = vmatprep.subr.mxu0 0.0
        %394 = vmatpush1.xpose.msra.mxu0 %v358
        %395 = vmatprep.subr.mxu0 0.0
        %396 = vmatpush1.xpose.msra.mxu0 %v357
        %397 = vmatprep.subr.mxu0 0.0
        %398 = vmatpush1.xpose.msra.mxu0 %v356
        %399 = vmatprep.subr.mxu0 0.0
        %400 = vmatpush1.xpose.msra.mxu0 %v355
        %401 = vmatprep.subr.mxu0 0.0
        %402 = vmatpush1.xpose.msra.mxu0 %v354
        %403 = vmatprep.subr.mxu0 0.0
        %404 = vmatpush1.xpose.msra.mxu0 %v353
        %405 = vmatprep.subr.mxu0 0.0
        %406 = vmatpush1.xpose.msra.mxu0 %v352
        %407 = vmatprep.subr.mxu0 0.0
        %408 = vmatpush1.xpose.msra.mxu0 %v351
        %409 = vmatprep.subr.mxu0 0.0
        %410 = vmatpush1.xpose.msra.mxu0 %v350
        %411 = vmatprep.subr.mxu0 0.0
        %412 = vmatpush1.xpose.msra.mxu0 %v349
        %413 = vmatprep.subr.mxu0 0.0
        %414 = vmatpush2.xpose.msra.mxu0 %v380
        %415 = vmatprep.subr.mxu0 0.0
        %416 = vmatpush2.xpose.msra.mxu0 %v379
        %417 = vmatprep.subr.mxu0 0.0
        %418 = vmatpush2.xpose.msra.mxu0 %v378
        %419 = vmatprep.subr.mxu0 0.0
        %420 = vmatpush2.xpose.msra.mxu0 %v377
        %421 = vmatprep.subr.mxu0 0.0
        %422 = vmatpush2.xpose.msra.mxu0 %v376
        %423 = vmatprep.subr.mxu0 0.0
        %424 = vmatpush2.xpose.msra.mxu0 %v375
        %425 = vmatprep.subr.mxu0 0.0
        %426 = vmatpush2.xpose.msra.mxu0 %v374
        %427 = vmatprep.subr.mxu0 0.0
        %428 = vmatpush2.xpose.msra.mxu0 %v373
        %429 = vmatprep.subr.mxu0 0.0
        %430 = vmatpush2.xpose.msra.mxu0 %v372
        %431 = vmatprep.subr.mxu0 0.0
        %432 = vmatpush2.xpose.msra.mxu0 %v371
        %433 = vmatprep.subr.mxu0 0.0
        %434 = vmatpush2.xpose.msra.mxu0 %v370
        %435 = vmatprep.subr.mxu0 0.0
        %436 = vmatpush2.xpose.msra.mxu0 %v369
        %437 = vmatprep.subr.mxu0 0.0
        %438 = vmatpush2.xpose.msra.mxu0 %v368
        %439 = vmatprep.subr.mxu0 0.0
        %440 = vmatpush2.xpose.msra.mxu0 %v367
        %441 = vmatprep.subr.mxu0 0.0
        %442 = vmatpush2.xpose.msra.mxu0 %v366
        %443 = vmatprep.subr.mxu0 0.0
        %444 = vmatpush2.xpose.msra.mxu0 %v365
        %445 = vmatprep.mubr.f32.mxu0 0.0
        %446 = vmatmul.mubr.f32.gmra.mxu0 %v285
        %v447 = vpop.f32.mrf.mxu0
        %v448 = vadd.f32 0.2, %v447
        %v449 = vpop.f32.mrf.mxu0
        %v450 = vadd.f32 0.2, %v449
        %451 = vmatprep.mubr.f32.mxu0 0.0
        %452 = vmatmul.mubr.f32.gmra.mxu0 %v286
        %v453 = vpop.f32.mrf.mxu0
        %v454 = vadd.f32 0.2, %v453
        %v455 = vpop.f32.mrf.mxu0
        %v456 = vadd.f32 0.2, %v455
        %457 = vmatprep.mubr.f32.mxu0 0.0
        %458 = vmatmul.mubr.f32.gmra.mxu0 %v287
        %v459 = vpop.f32.mrf.mxu0
        %v460 = vadd.f32 0.2, %v459
        %v461 = vpop.f32.mrf.mxu0
        %v462 = vadd.f32 0.2, %v461
        %463 = vmatprep.mubr.f32.mxu0 0.0
        %464 = vmatmul.mubr.f32.gmra.mxu0 %v288
        %v465 = vpop.f32.mrf.mxu0
        %v466 = vadd.f32 0.2, %v465
        %v467 = vpop.f32.mrf.mxu0
        %v468 = vadd.f32 0.2, %v467
        %469 = vmatprep.mubr.f32.mxu0 0.0
        %470 = vmatmul.mubr.f32.gmra.mxu0 %v289
        %v471 = vpop.f32.mrf.mxu0
        %v472 = vadd.f32 0.2, %v471
        %v473 = vpop.f32.mrf.mxu0
        %v474 = vadd.f32 0.2, %v473
        %475 = vmatprep.mubr.f32.mxu0 0.0
        %476 = vmatmul.mubr.f32.gmra.mxu0 %v290
        %v477 = vpop.f32.mrf.mxu0
        %v478 = vadd.f32 0.2, %v477
        %v479 = vpop.f32.mrf.mxu0
        %v480 = vadd.f32 0.2, %v479
        %481 = vmatprep.mubr.f32.mxu0 0.0
        %482 = vmatmul.mubr.f32.gmra.mxu0 %v291
        %v483 = vpop.f32.mrf.mxu0
        %v484 = vadd.f32 0.2, %v483
        %v485 = vpop.f32.mrf.mxu0
        %v486 = vadd.f32 0.2, %v485
        %487 = vmatprep.mubr.f32.mxu0 0.0
        %488 = vmatmul.mubr.f32.gmra.mxu0 %v292
        %v489 = vpop.f32.mrf.mxu0
        %v490 = vadd.f32 0.2, %v489
        %v491 = vpop.f32.mrf.mxu0
        %v492 = vadd.f32 0.2, %v491
        %493 = vmatprep.mubr.f32.mxu0 0.0
        %494 = vmatmul.mubr.f32.gmra.mxu0 %v293
        %v495 = vpop.f32.mrf.mxu0
        %v496 = vadd.f32 0.2, %v495
        %v497 = vpop.f32.mrf.mxu0
        %v498 = vadd.f32 0.2, %v497
        %499 = vmatprep.mubr.f32.mxu0 0.0
        %500 = vmatmul.mubr.f32.gmra.mxu0 %v294
        %v501 = vpop.f32.mrf.mxu0
        %v502 = vadd.f32 0.2, %v501
        %v503 = vpop.f32.mrf.mxu0
        %v504 = vadd.f32 0.2, %v503
        %505 = vmatprep.mubr.f32.mxu0 0.0
        %506 = vmatmul.mubr.f32.gmra.mxu0 %v295
        %v507 = vpop.f32.mrf.mxu0
        %v508 = vadd.f32 0.2, %v507
        %v509 = vpop.f32.mrf.mxu0
        %v510 = vadd.f32 0.2, %v509
        %511 = vmatprep.mubr.f32.mxu0 0.0
        %512 = vmatmul.mubr.f32.gmra.mxu0 %v296
        %v513 = vpop.f32.mrf.mxu0
        %v514 = vadd.f32 0.2, %v513
        %v515 = vpop.f32.mrf.mxu0
        %v516 = vadd.f32 0.2, %v515
        %517 = vmatprep.mubr.f32.mxu0 0.0
        %518 = vmatmul.mubr.f32.gmra.mxu0 %v297
        %v519 = vpop.f32.mrf.mxu0
        %v520 = vadd.f32 0.2, %v519
        %v521 = vpop.f32.mrf.mxu0
        %v522 = vadd.f32 0.2, %v521
        %523 = vmatprep.mubr.f32.mxu0 0.0
        %524 = vmatmul.mubr.f32.gmra.mxu0 %v298
        %v525 = vpop.f32.mrf.mxu0
        %v526 = vadd.f32 0.2, %v525
        %v527 = vpop.f32.mrf.mxu0
        %v528 = vadd.f32 0.2, %v527
        %529 = vmatprep.mubr.f32.mxu0 0.0
        %530 = vmatmul.mubr.f32.gmra.mxu0 %v299
        %v531 = vpop.f32.mrf.mxu0
        %v532 = vadd.f32 0.2, %v531
        %v533 = vpop.f32.mrf.mxu0
        %v534 = vadd.f32 0.2, %v533
        %535 = vmatprep.mubr.f32.mxu0 0.0
        %536 = vmatmul.mubr.f32.gmra.mxu0 %v300
        %v537 = vpop.f32.mrf.mxu0
        %v538 = vadd.f32 0.2, %v537
        %v539 = vpop.f32.mrf.mxu0
        %v540 = vadd.f32 0.2, %v539
        %541 = vmatprep.mubr.f32.mxu0 0.0
        %542 = vmatmul.mubr.f32.gmra.mxu0 %v301
        %v543 = vpop.f32.mrf.mxu0
        %v544 = vadd.f32 0.2, %v543
        %v545 = vpop.f32.mrf.mxu0
        %v546 = vadd.f32 0.2, %v545
        %547 = vmatprep.mubr.f32.mxu0 0.0
        %548 = vmatmul.mubr.f32.gmra.mxu0 %v302
        %v549 = vpop.f32.mrf.mxu0
        %v550 = vadd.f32 0.2, %v549
        %v551 = vpop.f32.mrf.mxu0
        %v552 = vadd.f32 0.2, %v551
        %553 = vmatprep.mubr.f32.mxu0 0.0
        %554 = vmatmul.mubr.f32.gmra.mxu0 %v303
        %v555 = vpop.f32.mrf.mxu0
        %v556 = vadd.f32 0.2, %v555
        %v557 = vpop.f32.mrf.mxu0
        %v558 = vadd.f32 0.2, %v557
        %559 = vmatprep.mubr.f32.mxu0 0.0
        %560 = vmatmul.mubr.f32.gmra.mxu0 %v304
        %v561 = vpop.f32.mrf.mxu0
        %v562 = vadd.f32 0.2, %v561
        %v563 = vpop.f32.mrf.mxu0
        %v564 = vadd.f32 0.2, %v563
        %565 = vmatprep.mubr.f32.mxu0 0.0
        %566 = vmatmul.mubr.f32.gmra.mxu0 %v305
        %v567 = vpop.f32.mrf.mxu0
        %v568 = vadd.f32 0.2, %v567
        %v569 = vpop.f32.mrf.mxu0
        %v570 = vadd.f32 0.2, %v569
        %571 = vmatprep.mubr.f32.mxu0 0.0
        %572 = vmatmul.mubr.f32.gmra.mxu0 %v306
        %v573 = vpop.f32.mrf.mxu0
        %v574 = vadd.f32 0.2, %v573
        %v575 = vpop.f32.mrf.mxu0
        %v576 = vadd.f32 0.2, %v575
        %577 = vmatprep.mubr.f32.mxu0 0.0
        %578 = vmatmul.mubr.f32.gmra.mxu0 %v307
        %v579 = vpop.f32.mrf.mxu0
        %v580 = vadd.f32 0.2, %v579
        %v581 = vpop.f32.mrf.mxu0
        %v582 = vadd.f32 0.2, %v581
        %583 = vmatprep.mubr.f32.mxu0 0.0
        %584 = vmatmul.mubr.f32.gmra.mxu0 %v308
        %v585 = vpop.f32.mrf.mxu0
        %v586 = vadd.f32 0.2, %v585
        %v587 = vpop.f32.mrf.mxu0
        %v588 = vadd.f32 0.2, %v587
        %589 = vmatprep.mubr.f32.mxu0 0.0
        %590 = vmatmul.mubr.f32.gmra.mxu0 %v309
        %v591 = vpop.f32.mrf.mxu0
        %v592 = vadd.f32 0.2, %v591
        %v593 = vpop.f32.mrf.mxu0
        %v594 = vadd.f32 0.2, %v593
        %595 = vmatprep.mubr.f32.mxu0 0.0
        %596 = vmatmul.mubr.f32.gmra.mxu0 %v310
        %v597 = vpop.f32.mrf.mxu0
        %v598 = vadd.f32 0.2, %v597
        %v599 = vpop.f32.mrf.mxu0
        %v600 = vadd.f32 0.2, %v599
        %601 = vmatprep.mubr.f32.mxu0 0.0
        %602 = vmatmul.mubr.f32.gmra.mxu0 %v311
        %v603 = vpop.f32.mrf.mxu0
        %v604 = vadd.f32 0.2, %v603
        %v605 = vpop.f32.mrf.mxu0
        %v606 = vadd.f32 0.2, %v605
        %607 = vmatprep.mubr.f32.mxu0 0.0
        %608 = vmatmul.mubr.f32.gmra.mxu0 %v312
        %v609 = vpop.f32.mrf.mxu0
        %v610 = vadd.f32 0.2, %v609
        %v611 = vpop.f32.mrf.mxu0
        %v612 = vadd.f32 0.2, %v611
        %613 = vmatprep.mubr.f32.mxu0 0.0
        %614 = vmatmul.mubr.f32.gmra.mxu0 %v313
        %v615 = vpop.f32.mrf.mxu0
        %v616 = vadd.f32 0.2, %v615
        %v617 = vpop.f32.mrf.mxu0
        %v618 = vadd.f32 0.2, %v617
        %619 = vmatprep.mubr.f32.mxu0 0.0
        %620 = vmatmul.mubr.f32.gmra.mxu0 %v314
        %v621 = vpop.f32.mrf.mxu0
        %v622 = vadd.f32 0.2, %v621
        %v623 = vpop.f32.mrf.mxu0
        %v624 = vadd.f32 0.2, %v623
        %625 = vmatprep.mubr.f32.mxu0 0.0
        %626 = vmatmul.mubr.f32.gmra.mxu0 %v315
        %v627 = vpop.f32.mrf.mxu0
        %v628 = vadd.f32 0.2, %v627
        %v629 = vpop.f32.mrf.mxu0
        %v630 = vadd.f32 0.2, %v629
        %631 = vmatprep.mubr.f32.mxu0 0.0
        %632 = vmatmul.mubr.f32.gmra.mxu0 %v316
        %v633 = vpop.f32.mrf.mxu0
        %v634 = vadd.f32 0.2, %v633
        %v635 = vpop.f32.mrf.mxu0
        %v636 = vadd.f32 0.2, %v635
        %637 = vmatprep.mubr.f32.mxu0 0.0
        %638 = vmatmul.mubr.f32.gmra.mxu0 %v317
        %v639 = vpop.f32.mrf.mxu0
        %v640 = vadd.f32 0.2, %v639
        %v641 = vpop.f32.mrf.mxu0
        %v642 = vadd.f32 0.2, %v641
        %643 = vmatprep.mubr.f32.mxu0 0.0
        %644 = vmatmul.mubr.f32.gmra.mxu0 %v318
        %v645 = vpop.f32.mrf.mxu0
        %v646 = vadd.f32 0.2, %v645
        %v647 = vpop.f32.mrf.mxu0
        %v648 = vadd.f32 0.2, %v647
        %649 = vmatprep.mubr.f32.mxu0 0.0
        %650 = vmatmul.mubr.f32.gmra.mxu0 %v319
        %v651 = vpop.f32.mrf.mxu0
        %v652 = vadd.f32 0.2, %v651
        %v653 = vpop.f32.mrf.mxu0
        %v654 = vadd.f32 0.2, %v653
        %655 = vmatprep.mubr.f32.mxu0 0.0
        %656 = vmatmul.mubr.f32.gmra.mxu0 %v320
        %v657 = vpop.f32.mrf.mxu0
        %v658 = vadd.f32 0.2, %v657
        %v659 = vpop.f32.mrf.mxu0
        %v660 = vadd.f32 0.2, %v659
        %661 = vmatprep.mubr.f32.mxu0 0.0
        %662 = vmatmul.mubr.f32.gmra.mxu0 %v321
        %v663 = vpop.f32.mrf.mxu0
        %v664 = vadd.f32 0.2, %v663
        %v665 = vpop.f32.mrf.mxu0
        %v666 = vadd.f32 0.2, %v665
        %667 = vmatprep.mubr.f32.mxu0 0.0
        %668 = vmatmul.mubr.f32.gmra.mxu0 %v322
        %v669 = vpop.f32.mrf.mxu0
        %v670 = vadd.f32 0.2, %v669
        %v671 = vpop.f32.mrf.mxu0
        %v672 = vadd.f32 0.2, %v671
        %673 = vmatprep.mubr.f32.mxu0 0.0
        %674 = vmatmul.mubr.f32.gmra.mxu0 %v323
        %v675 = vpop.f32.mrf.mxu0
        %v676 = vadd.f32 0.2, %v675
        %v677 = vpop.f32.mrf.mxu0
        %v678 = vadd.f32 0.2, %v677
        %679 = vmatprep.mubr.f32.mxu0 0.0
        %680 = vmatmul.mubr.f32.gmra.mxu0 %v324
        %v681 = vpop.f32.mrf.mxu0
        %v682 = vadd.f32 0.2, %v681
        %v683 = vpop.f32.mrf.mxu0
        %v684 = vadd.f32 0.2, %v683
        %685 = vmatprep.mubr.f32.mxu0 0.0
        %686 = vmatmul.mubr.f32.gmra.mxu0 %v325
        %v687 = vpop.f32.mrf.mxu0
        %v688 = vadd.f32 0.2, %v687
        %v689 = vpop.f32.mrf.mxu0
        %v690 = vadd.f32 0.2, %v689
        %691 = vmatprep.mubr.f32.mxu0 0.0
        %692 = vmatmul.mubr.f32.gmra.mxu0 %v326
        %v693 = vpop.f32.mrf.mxu0
        %v694 = vadd.f32 0.2, %v693
        %v695 = vpop.f32.mrf.mxu0
        %v696 = vadd.f32 0.2, %v695
        %697 = vmatprep.mubr.f32.mxu0 0.0
        %698 = vmatmul.mubr.f32.gmra.mxu0 %v327
        %v699 = vpop.f32.mrf.mxu0
        %v700 = vadd.f32 0.2, %v699
        %v701 = vpop.f32.mrf.mxu0
        %v702 = vadd.f32 0.2, %v701
        %703 = vmatprep.mubr.f32.mxu0 0.0
        %704 = vmatmul.mubr.f32.gmra.mxu0 %v328
        %v705 = vpop.f32.mrf.mxu0
        %v706 = vadd.f32 0.2, %v705
        %v707 = vpop.f32.mrf.mxu0
        %v708 = vadd.f32 0.2, %v707
        %709 = vmatprep.mubr.f32.mxu0 0.0
        %710 = vmatmul.mubr.f32.gmra.mxu0 %v329
        %v711 = vpop.f32.mrf.mxu0
        %v712 = vadd.f32 0.2, %v711
        %v713 = vpop.f32.mrf.mxu0
        %v714 = vadd.f32 0.2, %v713
        %715 = vmatprep.mubr.f32.mxu0 0.0
        %716 = vmatmul.mubr.f32.gmra.mxu0 %v330
        %v717 = vpop.f32.mrf.mxu0
        %v718 = vadd.f32 0.2, %v717
        %v719 = vpop.f32.mrf.mxu0
        %v720 = vadd.f32 0.2, %v719
        %721 = vmatprep.mubr.f32.mxu0 0.0
        %722 = vmatmul.mubr.f32.gmra.mxu0 %v331
        %v723 = vpop.f32.mrf.mxu0
        %v724 = vadd.f32 0.2, %v723
        %v725 = vpop.f32.mrf.mxu0
        %v726 = vadd.f32 0.2, %v725
        %727 = vmatprep.mubr.f32.mxu0 0.0
        %728 = vmatmul.mubr.f32.gmra.mxu0 %v332
        %v729 = vpop.f32.mrf.mxu0
        %v730 = vadd.f32 0.2, %v729
        %v731 = vpop.f32.mrf.mxu0
        %v732 = vadd.f32 0.2, %v731
        %733 = vmatprep.mubr.f32.mxu0 0.0
        %734 = vmatmul.mubr.f32.gmra.mxu0 %v333
        %v735 = vpop.f32.mrf.mxu0
        %v736 = vadd.f32 0.2, %v735
        %v737 = vpop.f32.mrf.mxu0
        %v738 = vadd.f32 0.2, %v737
        %739 = vmatprep.mubr.f32.mxu0 0.0
        %740 = vmatmul.mubr.f32.gmra.mxu0 %v334
        %v741 = vpop.f32.mrf.mxu0
        %v742 = vadd.f32 0.2, %v741
        %v743 = vpop.f32.mrf.mxu0
        %v744 = vadd.f32 0.2, %v743
        %745 = vmatprep.mubr.f32.mxu0 0.0
        %746 = vmatmul.mubr.f32.gmra.mxu0 %v335
        %v747 = vpop.f32.mrf.mxu0
        %v748 = vadd.f32 0.2, %v747
        %v749 = vpop.f32.mrf.mxu0
        %v750 = vadd.f32 0.2, %v749
        %751 = vmatprep.mubr.f32.mxu0 0.0
        %752 = vmatmul.mubr.f32.gmra.mxu0 %v336
        %v753 = vpop.f32.mrf.mxu0
        %v754 = vadd.f32 0.2, %v753
        %v755 = vpop.f32.mrf.mxu0
        %v756 = vadd.f32 0.2, %v755
        %757 = vmatprep.mubr.f32.mxu0 0.0
        %758 = vmatmul.mubr.f32.gmra.mxu0 %v337
        %v759 = vpop.f32.mrf.mxu0
        %v760 = vadd.f32 0.2, %v759
        %v761 = vpop.f32.mrf.mxu0
        %v762 = vadd.f32 0.2, %v761
        %763 = vmatprep.mubr.f32.mxu0 0.0
        %764 = vmatmul.mubr.f32.gmra.mxu0 %v338
        %v765 = vpop.f32.mrf.mxu0
        %v766 = vadd.f32 0.2, %v765
        %v767 = vpop.f32.mrf.mxu0
        %v768 = vadd.f32 0.2, %v767
        %769 = vmatprep.mubr.f32.mxu0 0.0
        %770 = vmatmul.mubr.f32.gmra.mxu0 %v339
        %v771 = vpop.f32.mrf.mxu0
        %v772 = vadd.f32 0.2, %v771
        %v773 = vpop.f32.mrf.mxu0
        %v774 = vadd.f32 0.2, %v773
        %775 = vmatprep.mubr.f32.mxu0 0.0
        %776 = vmatmul.mubr.f32.gmra.mxu0 %v340
        %v777 = vpop.f32.mrf.mxu0
        %v778 = vadd.f32 0.2, %v777
        %v779 = vpop.f32.mrf.mxu0
        %v780 = vadd.f32 0.2, %v779
        %781 = vmatprep.mubr.f32.mxu0 0.0
        %782 = vmatmul.mubr.f32.gmra.mxu0 %v341
        %v783 = vpop.f32.mrf.mxu0
        %v784 = vadd.f32 0.2, %v783
        %v785 = vpop.f32.mrf.mxu0
        %v786 = vadd.f32 0.2, %v785
        %787 = vmatprep.mubr.f32.mxu0 0.0
        %788 = vmatmul.mubr.f32.gmra.mxu0 %v342
        %v789 = vpop.f32.mrf.mxu0
        %v790 = vadd.f32 0.2, %v789
        %v791 = vpop.f32.mrf.mxu0
        %v792 = vadd.f32 0.2, %v791
        %793 = vmatprep.mubr.f32.mxu0 0.0
        %794 = vmatmul.mubr.f32.gmra.mxu0 %v343
        %v795 = vpop.f32.mrf.mxu0
        %v796 = vadd.f32 0.2, %v795
        %v797 = vpop.f32.mrf.mxu0
        %v798 = vadd.f32 0.2, %v797
        %799 = vmatprep.mubr.f32.mxu0 0.0
        %800 = vmatmul.mubr.f32.gmra.mxu0 %v344
        %v801 = vpop.f32.mrf.mxu0
        %v802 = vadd.f32 0.2, %v801
        %v803 = vpop.f32.mrf.mxu0
        %v804 = vadd.f32 0.2, %v803
        %805 = vmatprep.mubr.f32.mxu0 0.0
        %806 = vmatmul.mubr.f32.gmra.mxu0 %v345
        %v807 = vpop.f32.mrf.mxu0
        %v808 = vadd.f32 0.2, %v807
        %v809 = vpop.f32.mrf.mxu0
        %v810 = vadd.f32 0.2, %v809
        %811 = vmatprep.mubr.f32.mxu0 0.0
        %812 = vmatmul.mubr.f32.gmra.mxu0 %v346
        %v813 = vpop.f32.mrf.mxu0
        %v814 = vadd.f32 0.2, %v813
        %v815 = vpop.f32.mrf.mxu0
        %v816 = vadd.f32 0.2, %v815
        %817 = vmatprep.mubr.f32.mxu0 0.0
        %818 = vmatmul.mubr.f32.gmra.mxu0 %v347
        %v819 = vpop.f32.mrf.mxu0
        %v820 = vadd.f32 0.2, %v819
        %v821 = vpop.f32.mrf.mxu0
        %v822 = vadd.f32 0.2, %v821
        %823 = vmatprep.mubr.f32.mxu0 0.0
        %824 = vmatmul.mubr.f32.gmra.mxu0 %v348
        %v825 = vpop.f32.mrf.mxu0
        %v826 = vadd.f32 0.2, %v825
        %v827 = vpop.f32.mrf.mxu0
        %v828 = vadd.f32 0.2, %v827
        %829 = vdwg.mxu0
        %v830 = vld [vmem:[%s278] sm:$0xff]
        %v831 = vld [vmem:[%s278 + $0x8] sm:$0xff]
        %v832 = vld [vmem:[%s278 + $0x10] sm:$0xff]
        %v833 = vld [vmem:[%s278 + $0x18] sm:$0xff]
        %v834 = vld [vmem:[%s278 + $0x20] sm:$0xff]
        %v835 = vld [vmem:[%s278 + $0x28] sm:$0xff]
        %v836 = vld [vmem:[%s278 + $0x30] sm:$0xff]
        %v837 = vld [vmem:[%s278 + $0x38] sm:$0xff]
        %v838 = vld [vmem:[%s278 + $0x40] sm:$0xff]
        %v839 = vld [vmem:[%s278 + $0x48] sm:$0xff]
        %v840 = vld [vmem:[%s278 + $0x50] sm:$0xff]
        %v841 = vld [vmem:[%s278 + $0x58] sm:$0xff]
        %v842 = vld [vmem:[%s278 + $0x60] sm:$0xff]
        %v843 = vld [vmem:[%s278 + $0x68] sm:$0xff]
        %v844 = vld [vmem:[%s278 + $0x70] sm:$0xff]
        %v845 = vld [vmem:[%s278 + $0x78] sm:$0xff]
        %v846 = vld [vmem:[%s278 + $0x80] sm:$0xff]
        %v847 = vld [vmem:[%s278 + $0x88] sm:$0xff]
        %v848 = vld [vmem:[%s278 + $0x90] sm:$0xff]
        %v849 = vld [vmem:[%s278 + $0x98] sm:$0xff]
        %v850 = vld [vmem:[%s278 + $0xa0] sm:$0xff]
        %v851 = vld [vmem:[%s278 + $0xa8] sm:$0xff]
        %v852 = vld [vmem:[%s278 + $0xb0] sm:$0xff]
        %v853 = vld [vmem:[%s278 + $0xb8] sm:$0xff]
        %v854 = vld [vmem:[%s278 + $0xc0] sm:$0xff]
        %v855 = vld [vmem:[%s278 + $0xc8] sm:$0xff]
        %v856 = vld [vmem:[%s278 + $0xd0] sm:$0xff]
        %v857 = vld [vmem:[%s278 + $0xd8] sm:$0xff]
        %v858 = vld [vmem:[%s278 + $0xe0] sm:$0xff]
        %v859 = vld [vmem:[%s278 + $0xe8] sm:$0xff]
        %v860 = vld [vmem:[%s278 + $0xf0] sm:$0xff]
        %v861 = vld [vmem:[%s278 + $0xf8] sm:$0xff]
        %v862 = vld [vmem:[%s278 + $0x100] sm:$0xff]
        %v863 = vld [vmem:[%s278 + $0x108] sm:$0xff]
        %v864 = vld [vmem:[%s278 + $0x110] sm:$0xff]
        %v865 = vld [vmem:[%s278 + $0x118] sm:$0xff]
        %v866 = vld [vmem:[%s278 + $0x120] sm:$0xff]
        %v867 = vld [vmem:[%s278 + $0x128] sm:$0xff]
        %v868 = vld [vmem:[%s278 + $0x130] sm:$0xff]
        %v869 = vld [vmem:[%s278 + $0x138] sm:$0xff]
        %v870 = vld [vmem:[%s278 + $0x140] sm:$0xff]
        %v871 = vld [vmem:[%s278 + $0x148] sm:$0xff]
        %v872 = vld [vmem:[%s278 + $0x150] sm:$0xff]
        %v873 = vld [vmem:[%s278 + $0x158] sm:$0xff]
        %v874 = vld [vmem:[%s278 + $0x160] sm:$0xff]
        %v875 = vld [vmem:[%s278 + $0x168] sm:$0xff]
        %v876 = vld [vmem:[%s278 + $0x170] sm:$0xff]
        %v877 = vld [vmem:[%s278 + $0x178] sm:$0xff]
        %v878 = vld [vmem:[%s278 + $0x180] sm:$0xff]
        %v879 = vld [vmem:[%s278 + $0x188] sm:$0xff]
        %v880 = vld [vmem:[%s278 + $0x190] sm:$0xff]
        %v881 = vld [vmem:[%s278 + $0x198] sm:$0xff]
        %v882 = vld [vmem:[%s278 + $0x1a0] sm:$0xff]
        %v883 = vld [vmem:[%s278 + $0x1a8] sm:$0xff]
        %v884 = vld [vmem:[%s278 + $0x1b0] sm:$0xff]
        %v885 = vld [vmem:[%s278 + $0x1b8] sm:$0xff]
        %v886 = vld [vmem:[%s278 + $0x1c0] sm:$0xff]
        %v887 = vld [vmem:[%s278 + $0x1c8] sm:$0xff]
        %v888 = vld [vmem:[%s278 + $0x1d0] sm:$0xff]
        %v889 = vld [vmem:[%s278 + $0x1d8] sm:$0xff]
        %v890 = vld [vmem:[%s278 + $0x1e0] sm:$0xff]
        %v891 = vld [vmem:[%s278 + $0x1e8] sm:$0xff]
        %v892 = vld [vmem:[%s278 + $0x1f0] sm:$0xff]
        %v893 = vld [vmem:[%s278 + $0x1f8] sm:$0xff]
        %895 = vset.pattern.permute.xlu0 0
        %896 = vperm.xlu0 %895, %v830
        %v897 = vpop.permute.xlu0 %896
        %900 = vset.pattern.permute.xlu0 0
        %901 = vperm.xlu0 %900, %v831
        %v902 = vpop.permute.xlu0 %901
        %905 = vset.pattern.permute.xlu0 0
        %906 = vperm.xlu0 %905, %v832
        %v907 = vpop.permute.xlu0 %906
        %910 = vset.pattern.permute.xlu0 0
        %911 = vperm.xlu0 %910, %v833
        %v912 = vpop.permute.xlu0 %911
        %915 = vset.pattern.permute.xlu0 0
        %916 = vperm.xlu0 %915, %v834
        %v917 = vpop.permute.xlu0 %916
        %920 = vset.pattern.permute.xlu0 0
        %921 = vperm.xlu0 %920, %v835
        %v922 = vpop.permute.xlu0 %921
        %925 = vset.pattern.permute.xlu0 0
        %926 = vperm.xlu0 %925, %v836
        %v927 = vpop.permute.xlu0 %926
        %930 = vset.pattern.permute.xlu0 0
        %931 = vperm.xlu0 %930, %v837
        %v932 = vpop.permute.xlu0 %931
        %935 = vset.pattern.permute.xlu0 0
        %936 = vperm.xlu0 %935, %v838
        %v937 = vpop.permute.xlu0 %936
        %940 = vset.pattern.permute.xlu0 0
        %941 = vperm.xlu0 %940, %v839
        %v942 = vpop.permute.xlu0 %941
        %945 = vset.pattern.permute.xlu0 0
        %946 = vperm.xlu0 %945, %v840
        %v947 = vpop.permute.xlu0 %946
        %950 = vset.pattern.permute.xlu0 0
        %951 = vperm.xlu0 %950, %v841
        %v952 = vpop.permute.xlu0 %951
        %955 = vset.pattern.permute.xlu0 0
        %956 = vperm.xlu0 %955, %v842
        %v957 = vpop.permute.xlu0 %956
        %960 = vset.pattern.permute.xlu0 0
        %961 = vperm.xlu0 %960, %v843
        %v962 = vpop.permute.xlu0 %961
        %965 = vset.pattern.permute.xlu0 0
        %966 = vperm.xlu0 %965, %v844
        %v967 = vpop.permute.xlu0 %966
        %970 = vset.pattern.permute.xlu0 0
        %971 = vperm.xlu0 %970, %v845
        %v972 = vpop.permute.xlu0 %971
        %975 = vset.pattern.permute.xlu0 0
        %976 = vperm.xlu0 %975, %v846
        %v977 = vpop.permute.xlu0 %976
        %980 = vset.pattern.permute.xlu0 0
        %981 = vperm.xlu0 %980, %v847
        %v982 = vpop.permute.xlu0 %981
        %985 = vset.pattern.permute.xlu0 0
        %986 = vperm.xlu0 %985, %v848
        %v987 = vpop.permute.xlu0 %986
        %990 = vset.pattern.permute.xlu0 0
        %991 = vperm.xlu0 %990, %v849
        %v992 = vpop.permute.xlu0 %991
        %995 = vset.pattern.permute.xlu0 0
        %996 = vperm.xlu0 %995, %v850
        %v997 = vpop.permute.xlu0 %996
        %1000 = vset.pattern.permute.xlu0 0
        %1001 = vperm.xlu0 %1000, %v851
        %v1002 = vpop.permute.xlu0 %1001
        %1005 = vset.pattern.permute.xlu0 0
        %1006 = vperm.xlu0 %1005, %v852
        %v1007 = vpop.permute.xlu0 %1006
        %1010 = vset.pattern.permute.xlu0 0
        %1011 = vperm.xlu0 %1010, %v853
        %v1012 = vpop.permute.xlu0 %1011
        %1015 = vset.pattern.permute.xlu0 0
        %1016 = vperm.xlu0 %1015, %v854
        %v1017 = vpop.permute.xlu0 %1016
        %1020 = vset.pattern.permute.xlu0 0
        %1021 = vperm.xlu0 %1020, %v855
        %v1022 = vpop.permute.xlu0 %1021
        %1025 = vset.pattern.permute.xlu0 0
        %1026 = vperm.xlu0 %1025, %v856
        %v1027 = vpop.permute.xlu0 %1026
        %1030 = vset.pattern.permute.xlu0 0
        %1031 = vperm.xlu0 %1030, %v857
        %v1032 = vpop.permute.xlu0 %1031
        %1035 = vset.pattern.permute.xlu0 0
        %1036 = vperm.xlu0 %1035, %v858
        %v1037 = vpop.permute.xlu0 %1036
        %1040 = vset.pattern.permute.xlu0 0
        %1041 = vperm.xlu0 %1040, %v859
        %v1042 = vpop.permute.xlu0 %1041
        %1045 = vset.pattern.permute.xlu0 0
        %1046 = vperm.xlu0 %1045, %v860
        %v1047 = vpop.permute.xlu0 %1046
        %1050 = vset.pattern.permute.xlu0 0
        %1051 = vperm.xlu0 %1050, %v861
        %v1052 = vpop.permute.xlu0 %1051
        %1055 = vset.pattern.permute.xlu0 0
        %1056 = vperm.xlu0 %1055, %v862
        %v1057 = vpop.permute.xlu0 %1056
        %1060 = vset.pattern.permute.xlu0 0
        %1061 = vperm.xlu0 %1060, %v863
        %v1062 = vpop.permute.xlu0 %1061
        %1065 = vset.pattern.permute.xlu0 0
        %1066 = vperm.xlu0 %1065, %v864
        %v1067 = vpop.permute.xlu0 %1066
        %1070 = vset.pattern.permute.xlu0 0
        %1071 = vperm.xlu0 %1070, %v865
        %v1072 = vpop.permute.xlu0 %1071
        %1075 = vset.pattern.permute.xlu0 0
        %1076 = vperm.xlu0 %1075, %v866
        %v1077 = vpop.permute.xlu0 %1076
        %1080 = vset.pattern.permute.xlu0 0
        %1081 = vperm.xlu0 %1080, %v867
        %v1082 = vpop.permute.xlu0 %1081
        %1085 = vset.pattern.permute.xlu0 0
        %1086 = vperm.xlu0 %1085, %v868
        %v1087 = vpop.permute.xlu0 %1086
        %1090 = vset.pattern.permute.xlu0 0
        %1091 = vperm.xlu0 %1090, %v869
        %v1092 = vpop.permute.xlu0 %1091
        %1095 = vset.pattern.permute.xlu0 0
        %1096 = vperm.xlu0 %1095, %v870
        %v1097 = vpop.permute.xlu0 %1096
        %1100 = vset.pattern.permute.xlu0 0
        %1101 = vperm.xlu0 %1100, %v871
        %v1102 = vpop.permute.xlu0 %1101
        %1105 = vset.pattern.permute.xlu0 0
        %1106 = vperm.xlu0 %1105, %v872
        %v1107 = vpop.permute.xlu0 %1106
        %1110 = vset.pattern.permute.xlu0 0
        %1111 = vperm.xlu0 %1110, %v873
        %v1112 = vpop.permute.xlu0 %1111
        %1115 = vset.pattern.permute.xlu0 0
        %1116 = vperm.xlu0 %1115, %v874
        %v1117 = vpop.permute.xlu0 %1116
        %1120 = vset.pattern.permute.xlu0 0
        %1121 = vperm.xlu0 %1120, %v875
        %v1122 = vpop.permute.xlu0 %1121
        %1125 = vset.pattern.permute.xlu0 0
        %1126 = vperm.xlu0 %1125, %v876
        %v1127 = vpop.permute.xlu0 %1126
        %1130 = vset.pattern.permute.xlu0 0
        %1131 = vperm.xlu0 %1130, %v877
        %v1132 = vpop.permute.xlu0 %1131
        %1135 = vset.pattern.permute.xlu0 0
        %1136 = vperm.xlu0 %1135, %v878
        %v1137 = vpop.permute.xlu0 %1136
        %1140 = vset.pattern.permute.xlu0 0
        %1141 = vperm.xlu0 %1140, %v879
        %v1142 = vpop.permute.xlu0 %1141
        %1145 = vset.pattern.permute.xlu0 0
        %1146 = vperm.xlu0 %1145, %v880
        %v1147 = vpop.permute.xlu0 %1146
        %1150 = vset.pattern.permute.xlu0 0
        %1151 = vperm.xlu0 %1150, %v881
        %v1152 = vpop.permute.xlu0 %1151
        %1155 = vset.pattern.permute.xlu0 0
        %1156 = vperm.xlu0 %1155, %v882
        %v1157 = vpop.permute.xlu0 %1156
        %1160 = vset.pattern.permute.xlu0 0
        %1161 = vperm.xlu0 %1160, %v883
        %v1162 = vpop.permute.xlu0 %1161
        %1165 = vset.pattern.permute.xlu0 0
        %1166 = vperm.xlu0 %1165, %v884
        %v1167 = vpop.permute.xlu0 %1166
        %1170 = vset.pattern.permute.xlu0 0
        %1171 = vperm.xlu0 %1170, %v885
        %v1172 = vpop.permute.xlu0 %1171
        %1175 = vset.pattern.permute.xlu0 0
        %1176 = vperm.xlu0 %1175, %v886
        %v1177 = vpop.permute.xlu0 %1176
        %1180 = vset.pattern.permute.xlu0 0
        %1181 = vperm.xlu0 %1180, %v887
        %v1182 = vpop.permute.xlu0 %1181
        %1185 = vset.pattern.permute.xlu0 0
        %1186 = vperm.xlu0 %1185, %v888
        %v1187 = vpop.permute.xlu0 %1186
        %1190 = vset.pattern.permute.xlu0 0
        %1191 = vperm.xlu0 %1190, %v889
        %v1192 = vpop.permute.xlu0 %1191
        %1195 = vset.pattern.permute.xlu0 0
        %1196 = vperm.xlu0 %1195, %v890
        %v1197 = vpop.permute.xlu0 %1196
        %1200 = vset.pattern.permute.xlu0 0
        %1201 = vperm.xlu0 %1200, %v891
        %v1202 = vpop.permute.xlu0 %1201
        %1205 = vset.pattern.permute.xlu0 0
        %1206 = vperm.xlu0 %1205, %v892
        %v1207 = vpop.permute.xlu0 %1206
        %1210 = vset.pattern.permute.xlu0 0
        %1211 = vperm.xlu0 %1210, %v893
        %v1212 = vpop.permute.xlu0 %1211
        %v1214 = vsub.f32 %v448, %v897
        %v1215 = vsub.f32 %v450, %v897
        %v1216 = vsub.f32 %v454, %v902
        %v1217 = vsub.f32 %v456, %v902
        %v1218 = vsub.f32 %v460, %v907
        %v1219 = vsub.f32 %v462, %v907
        %v1220 = vsub.f32 %v466, %v912
        %v1221 = vsub.f32 %v468, %v912
        %v1222 = vsub.f32 %v472, %v917
        %v1223 = vsub.f32 %v474, %v917
        %v1224 = vsub.f32 %v478, %v922
        %v1225 = vsub.f32 %v480, %v922
        %v1226 = vsub.f32 %v484, %v927
        %v1227 = vsub.f32 %v486, %v927
        %v1228 = vsub.f32 %v490, %v932
        %v1229 = vsub.f32 %v492, %v932
        %v1230 = vsub.f32 %v496, %v937
        %v1231 = vsub.f32 %v498, %v937
        %v1232 = vsub.f32 %v502, %v942
        %v1233 = vsub.f32 %v504, %v942
        %v1234 = vsub.f32 %v508, %v947
        %v1235 = vsub.f32 %v510, %v947
        %v1236 = vsub.f32 %v514, %v952
        %v1237 = vsub.f32 %v516, %v952
        %v1238 = vsub.f32 %v520, %v957
        %v1239 = vsub.f32 %v522, %v957
        %v1240 = vsub.f32 %v526, %v962
        %v1241 = vsub.f32 %v528, %v962
        %v1242 = vsub.f32 %v532, %v967
        %v1243 = vsub.f32 %v534, %v967
        %v1244 = vsub.f32 %v538, %v972
        %v1245 = vsub.f32 %v540, %v972
        %v1246 = vsub.f32 %v544, %v977
        %v1247 = vsub.f32 %v546, %v977
        %v1248 = vsub.f32 %v550, %v982
        %v1249 = vsub.f32 %v552, %v982
        %v1250 = vsub.f32 %v556, %v987
        %v1251 = vsub.f32 %v558, %v987
        %v1252 = vsub.f32 %v562, %v992
        %v1253 = vsub.f32 %v564, %v992
        %v1254 = vsub.f32 %v568, %v997
        %v1255 = vsub.f32 %v570, %v997
        %v1256 = vsub.f32 %v574, %v1002
        %v1257 = vsub.f32 %v576, %v1002
        %v1258 = vsub.f32 %v580, %v1007
        %v1259 = vsub.f32 %v582, %v1007
        %v1260 = vsub.f32 %v586, %v1012
        %v1261 = vsub.f32 %v588, %v1012
        %v1262 = vsub.f32 %v592, %v1017
        %v1263 = vsub.f32 %v594, %v1017
        %v1264 = vsub.f32 %v598, %v1022
        %v1265 = vsub.f32 %v600, %v1022
        %v1266 = vsub.f32 %v604, %v1027
        %v1267 = vsub.f32 %v606, %v1027
        %v1268 = vsub.f32 %v610, %v1032
        %v1269 = vsub.f32 %v612, %v1032
        %v1270 = vsub.f32 %v616, %v1037
        %v1271 = vsub.f32 %v618, %v1037
        %v1272 = vsub.f32 %v622, %v1042
        %v1273 = vsub.f32 %v624, %v1042
        %v1274 = vsub.f32 %v628, %v1047
        %v1275 = vsub.f32 %v630, %v1047
        %v1276 = vsub.f32 %v634, %v1052
        %v1277 = vsub.f32 %v636, %v1052
        %v1278 = vsub.f32 %v640, %v1057
        %v1279 = vsub.f32 %v642, %v1057
        %v1280 = vsub.f32 %v646, %v1062
        %v1281 = vsub.f32 %v648, %v1062
        %v1282 = vsub.f32 %v652, %v1067
        %v1283 = vsub.f32 %v654, %v1067
        %v1284 = vsub.f32 %v658, %v1072
        %v1285 = vsub.f32 %v660, %v1072
        %v1286 = vsub.f32 %v664, %v1077
        %v1287 = vsub.f32 %v666, %v1077
        %v1288 = vsub.f32 %v670, %v1082
        %v1289 = vsub.f32 %v672, %v1082
        %v1290 = vsub.f32 %v676, %v1087
        %v1291 = vsub.f32 %v678, %v1087
        %v1292 = vsub.f32 %v682, %v1092
        %v1293 = vsub.f32 %v684, %v1092
        %v1294 = vsub.f32 %v688, %v1097
        %v1295 = vsub.f32 %v690, %v1097
        %v1296 = vsub.f32 %v694, %v1102
        %v1297 = vsub.f32 %v696, %v1102
        %v1298 = vsub.f32 %v700, %v1107
        %v1299 = vsub.f32 %v702, %v1107
        %v1300 = vsub.f32 %v706, %v1112
        %v1301 = vsub.f32 %v708, %v1112
        %v1302 = vsub.f32 %v712, %v1117
        %v1303 = vsub.f32 %v714, %v1117
        %v1304 = vsub.f32 %v718, %v1122
        %v1305 = vsub.f32 %v720, %v1122
        %v1306 = vsub.f32 %v724, %v1127
        %v1307 = vsub.f32 %v726, %v1127
        %v1308 = vsub.f32 %v730, %v1132
        %v1309 = vsub.f32 %v732, %v1132
        %v1310 = vsub.f32 %v736, %v1137
        %v1311 = vsub.f32 %v738, %v1137
        %v1312 = vsub.f32 %v742, %v1142
        %v1313 = vsub.f32 %v744, %v1142
        %v1314 = vsub.f32 %v748, %v1147
        %v1315 = vsub.f32 %v750, %v1147
        %v1316 = vsub.f32 %v754, %v1152
        %v1317 = vsub.f32 %v756, %v1152
        %v1318 = vsub.f32 %v760, %v1157
        %v1319 = vsub.f32 %v762, %v1157
        %v1320 = vsub.f32 %v766, %v1162
        %v1321 = vsub.f32 %v768, %v1162
        %v1322 = vsub.f32 %v772, %v1167
        %v1323 = vsub.f32 %v774, %v1167
        %v1324 = vsub.f32 %v778, %v1172
        %v1325 = vsub.f32 %v780, %v1172
        %v1326 = vsub.f32 %v784, %v1177
        %v1327 = vsub.f32 %v786, %v1177
        %v1328 = vsub.f32 %v790, %v1182
        %v1329 = vsub.f32 %v792, %v1182
        %v1330 = vsub.f32 %v796, %v1187
        %v1331 = vsub.f32 %v798, %v1187
        %v1332 = vsub.f32 %v802, %v1192
        %v1333 = vsub.f32 %v804, %v1192
        %v1334 = vsub.f32 %v808, %v1197
        %v1335 = vsub.f32 %v810, %v1197
        %v1336 = vsub.f32 %v814, %v1202
        %v1337 = vsub.f32 %v816, %v1202
        %v1338 = vsub.f32 %v820, %v1207
        %v1339 = vsub.f32 %v822, %v1207
        %v1340 = vsub.f32 %v826, %v1212
        %v1341 = vsub.f32 %v828, %v1212
        %v1342 = vmax.f32 %v1214, 0.0
        %v1343 = vmax.f32 %v1215, 0.0
        %v1344 = vmax.f32 %v1216, 0.0
        %v1345 = vmax.f32 %v1217, 0.0
        %v1346 = vmax.f32 %v1218, 0.0
        %v1347 = vmax.f32 %v1219, 0.0
        %v1348 = vmax.f32 %v1220, 0.0
        %v1349 = vmax.f32 %v1221, 0.0
        %v1350 = vmax.f32 %v1222, 0.0
        %v1351 = vmax.f32 %v1223, 0.0
        %v1352 = vmax.f32 %v1224, 0.0
        %v1353 = vmax.f32 %v1225, 0.0
        %v1354 = vmax.f32 %v1226, 0.0
        %v1355 = vmax.f32 %v1227, 0.0
        %v1356 = vmax.f32 %v1228, 0.0
        %v1357 = vmax.f32 %v1229, 0.0
        %v1358 = vmax.f32 %v1230, 0.0
        %v1359 = vmax.f32 %v1231, 0.0
        %v1360 = vmax.f32 %v1232, 0.0
        %v1361 = vmax.f32 %v1233, 0.0
        %v1362 = vmax.f32 %v1234, 0.0
        %v1363 = vmax.f32 %v1235, 0.0
        %v1364 = vmax.f32 %v1236, 0.0
        %v1365 = vmax.f32 %v1237, 0.0
        %v1366 = vmax.f32 %v1238, 0.0
        %v1367 = vmax.f32 %v1239, 0.0
        %v1368 = vmax.f32 %v1240, 0.0
        %v1369 = vmax.f32 %v1241, 0.0
        %v1370 = vmax.f32 %v1242, 0.0
        %v1371 = vmax.f32 %v1243, 0.0
        %v1372 = vmax.f32 %v1244, 0.0
        %v1373 = vmax.f32 %v1245, 0.0
        %v1374 = vmax.f32 %v1246, 0.0
        %v1375 = vmax.f32 %v1247, 0.0
        %v1376 = vmax.f32 %v1248, 0.0
        %v1377 = vmax.f32 %v1249, 0.0
        %v1378 = vmax.f32 %v1250, 0.0
        %v1379 = vmax.f32 %v1251, 0.0
        %v1380 = vmax.f32 %v1252, 0.0
        %v1381 = vmax.f32 %v1253, 0.0
        %v1382 = vmax.f32 %v1254, 0.0
        %v1383 = vmax.f32 %v1255, 0.0
        %v1384 = vmax.f32 %v1256, 0.0
        %v1385 = vmax.f32 %v1257, 0.0
        %v1386 = vmax.f32 %v1258, 0.0
        %v1387 = vmax.f32 %v1259, 0.0
        %v1388 = vmax.f32 %v1260, 0.0
        %v1389 = vmax.f32 %v1261, 0.0
        %v1390 = vmax.f32 %v1262, 0.0
        %v1391 = vmax.f32 %v1263, 0.0
        %v1392 = vmax.f32 %v1264, 0.0
        %v1393 = vmax.f32 %v1265, 0.0
        %v1394 = vmax.f32 %v1266, 0.0
        %v1395 = vmax.f32 %v1267, 0.0
        %v1396 = vmax.f32 %v1268, 0.0
        %v1397 = vmax.f32 %v1269, 0.0
        %v1398 = vmax.f32 %v1270, 0.0
        %v1399 = vmax.f32 %v1271, 0.0
        %v1400 = vmax.f32 %v1272, 0.0
        %v1401 = vmax.f32 %v1273, 0.0
        %v1402 = vmax.f32 %v1274, 0.0
        %v1403 = vmax.f32 %v1275, 0.0
        %v1404 = vmax.f32 %v1276, 0.0
        %v1405 = vmax.f32 %v1277, 0.0
        %v1406 = vmax.f32 %v1278, 0.0
        %v1407 = vmax.f32 %v1279, 0.0
        %v1408 = vmax.f32 %v1280, 0.0
        %v1409 = vmax.f32 %v1281, 0.0
        %v1410 = vmax.f32 %v1282, 0.0
        %v1411 = vmax.f32 %v1283, 0.0
        %v1412 = vmax.f32 %v1284, 0.0
        %v1413 = vmax.f32 %v1285, 0.0
        %v1414 = vmax.f32 %v1286, 0.0
        %v1415 = vmax.f32 %v1287, 0.0
        %v1416 = vmax.f32 %v1288, 0.0
        %v1417 = vmax.f32 %v1289, 0.0
        %v1418 = vmax.f32 %v1290, 0.0
        %v1419 = vmax.f32 %v1291, 0.0
        %v1420 = vmax.f32 %v1292, 0.0
        %v1421 = vmax.f32 %v1293, 0.0
        %v1422 = vmax.f32 %v1294, 0.0
        %v1423 = vmax.f32 %v1295, 0.0
        %v1424 = vmax.f32 %v1296, 0.0
        %v1425 = vmax.f32 %v1297, 0.0
        %v1426 = vmax.f32 %v1298, 0.0
        %v1427 = vmax.f32 %v1299, 0.0
        %v1428 = vmax.f32 %v1300, 0.0
        %v1429 = vmax.f32 %v1301, 0.0
        %v1430 = vmax.f32 %v1302, 0.0
        %v1431 = vmax.f32 %v1303, 0.0
        %v1432 = vmax.f32 %v1304, 0.0
        %v1433 = vmax.f32 %v1305, 0.0
        %v1434 = vmax.f32 %v1306, 0.0
        %v1435 = vmax.f32 %v1307, 0.0
        %v1436 = vmax.f32 %v1308, 0.0
        %v1437 = vmax.f32 %v1309, 0.0
        %v1438 = vmax.f32 %v1310, 0.0
        %v1439 = vmax.f32 %v1311, 0.0
        %v1440 = vmax.f32 %v1312, 0.0
        %v1441 = vmax.f32 %v1313, 0.0
        %v1442 = vmax.f32 %v1314, 0.0
        %v1443 = vmax.f32 %v1315, 0.0
        %v1444 = vmax.f32 %v1316, 0.0
        %v1445 = vmax.f32 %v1317, 0.0
        %v1446 = vmax.f32 %v1318, 0.0
        %v1447 = vmax.f32 %v1319, 0.0
        %v1448 = vmax.f32 %v1320, 0.0
        %v1449 = vmax.f32 %v1321, 0.0
        %v1450 = vmax.f32 %v1322, 0.0
        %v1451 = vmax.f32 %v1323, 0.0
        %v1452 = vmax.f32 %v1324, 0.0
        %v1453 = vmax.f32 %v1325, 0.0
        %v1454 = vmax.f32 %v1326, 0.0
        %v1455 = vmax.f32 %v1327, 0.0
        %v1456 = vmax.f32 %v1328, 0.0
        %v1457 = vmax.f32 %v1329, 0.0
        %v1458 = vmax.f32 %v1330, 0.0
        %v1459 = vmax.f32 %v1331, 0.0
        %v1460 = vmax.f32 %v1332, 0.0
        %v1461 = vmax.f32 %v1333, 0.0
        %v1462 = vmax.f32 %v1334, 0.0
        %v1463 = vmax.f32 %v1335, 0.0
        %v1464 = vmax.f32 %v1336, 0.0
        %v1465 = vmax.f32 %v1337, 0.0
        %v1466 = vmax.f32 %v1338, 0.0
        %v1467 = vmax.f32 %v1339, 0.0
        %v1468 = vmax.f32 %v1340, 0.0
        %v1469 = vmax.f32 %v1341, 0.0
        %v1470 = vld [vmem:[%s283] sm:$0x3]
        %v1472 = vlaneseq
        %v1473 = vshrl.u32 %v1472, 7
        %v1474 = vsub.s32 0, %v1473
        %v1475 = vrot.slane %v1470, %v1474
        %v1476 = vlaneseq
        %v1477 = vshrl.u32 %v1476, 7
        %v1478 = vsub.s32 1, %v1477
        %v1479 = vrot.slane %v1470, %v1478
        %v1482 = vsub.f32 %v448, %v1475
        %v1483 = vsub.f32 %v450, %v1479
        %v1484 = vsub.f32 %v454, %v1475
        %v1485 = vsub.f32 %v456, %v1479
        %v1486 = vsub.f32 %v460, %v1475
        %v1487 = vsub.f32 %v462, %v1479
        %v1488 = vsub.f32 %v466, %v1475
        %v1489 = vsub.f32 %v468, %v1479
        %v1490 = vsub.f32 %v472, %v1475
        %v1491 = vsub.f32 %v474, %v1479
        %v1492 = vsub.f32 %v478, %v1475
        %v1493 = vsub.f32 %v480, %v1479
        %v1494 = vsub.f32 %v484, %v1475
        %v1495 = vsub.f32 %v486, %v1479
        %v1496 = vsub.f32 %v490, %v1475
        %v1497 = vsub.f32 %v492, %v1479
        %v1498 = vsub.f32 %v496, %v1475
        %v1499 = vsub.f32 %v498, %v1479
        %v1500 = vsub.f32 %v502, %v1475
        %v1501 = vsub.f32 %v504, %v1479
        %v1502 = vsub.f32 %v508, %v1475
        %v1503 = vsub.f32 %v510, %v1479
        %v1504 = vsub.f32 %v514, %v1475
        %v1505 = vsub.f32 %v516, %v1479
        %v1506 = vsub.f32 %v520, %v1475
        %v1507 = vsub.f32 %v522, %v1479
        %v1508 = vsub.f32 %v526, %v1475
        %v1509 = vsub.f32 %v528, %v1479
        %v1510 = vsub.f32 %v532, %v1475
        %v1511 = vsub.f32 %v534, %v1479
        %v1512 = vsub.f32 %v538, %v1475
        %v1513 = vsub.f32 %v540, %v1479
        %v1514 = vsub.f32 %v544, %v1475
        %v1515 = vsub.f32 %v546, %v1479
        %v1516 = vsub.f32 %v550, %v1475
        %v1517 = vsub.f32 %v552, %v1479
        %v1518 = vsub.f32 %v556, %v1475
        %v1519 = vsub.f32 %v558, %v1479
        %v1520 = vsub.f32 %v562, %v1475
        %v1521 = vsub.f32 %v564, %v1479
        %v1522 = vsub.f32 %v568, %v1475
        %v1523 = vsub.f32 %v570, %v1479
        %v1524 = vsub.f32 %v574, %v1475
        %v1525 = vsub.f32 %v576, %v1479
        %v1526 = vsub.f32 %v580, %v1475
        %v1527 = vsub.f32 %v582, %v1479
        %v1528 = vsub.f32 %v586, %v1475
        %v1529 = vsub.f32 %v588, %v1479
        %v1530 = vsub.f32 %v592, %v1475
        %v1531 = vsub.f32 %v594, %v1479
        %v1532 = vsub.f32 %v598, %v1475
        %v1533 = vsub.f32 %v600, %v1479
        %v1534 = vsub.f32 %v604, %v1475
        %v1535 = vsub.f32 %v606, %v1479
        %v1536 = vsub.f32 %v610, %v1475
        %v1537 = vsub.f32 %v612, %v1479
        %v1538 = vsub.f32 %v616, %v1475
        %v1539 = vsub.f32 %v618, %v1479
        %v1540 = vsub.f32 %v622, %v1475
        %v1541 = vsub.f32 %v624, %v1479
        %v1542 = vsub.f32 %v628, %v1475
        %v1543 = vsub.f32 %v630, %v1479
        %v1544 = vsub.f32 %v634, %v1475
        %v1545 = vsub.f32 %v636, %v1479
        %v1546 = vsub.f32 %v640, %v1475
        %v1547 = vsub.f32 %v642, %v1479
        %v1548 = vsub.f32 %v646, %v1475
        %v1549 = vsub.f32 %v648, %v1479
        %v1550 = vsub.f32 %v652, %v1475
        %v1551 = vsub.f32 %v654, %v1479
        %v1552 = vsub.f32 %v658, %v1475
        %v1553 = vsub.f32 %v660, %v1479
        %v1554 = vsub.f32 %v664, %v1475
        %v1555 = vsub.f32 %v666, %v1479
        %v1556 = vsub.f32 %v670, %v1475
        %v1557 = vsub.f32 %v672, %v1479
        %v1558 = vsub.f32 %v676, %v1475
        %v1559 = vsub.f32 %v678, %v1479
        %v1560 = vsub.f32 %v682, %v1475
        %v1561 = vsub.f32 %v684, %v1479
        %v1562 = vsub.f32 %v688, %v1475
        %v1563 = vsub.f32 %v690, %v1479
        %v1564 = vsub.f32 %v694, %v1475
        %v1565 = vsub.f32 %v696, %v1479
        %v1566 = vsub.f32 %v700, %v1475
        %v1567 = vsub.f32 %v702, %v1479
        %v1568 = vsub.f32 %v706, %v1475
        %v1569 = vsub.f32 %v708, %v1479
        %v1570 = vsub.f32 %v712, %v1475
        %v1571 = vsub.f32 %v714, %v1479
        %v1572 = vsub.f32 %v718, %v1475
        %v1573 = vsub.f32 %v720, %v1479
        %v1574 = vsub.f32 %v724, %v1475
        %v1575 = vsub.f32 %v726, %v1479
        %v1576 = vsub.f32 %v730, %v1475
        %v1577 = vsub.f32 %v732, %v1479
        %v1578 = vsub.f32 %v736, %v1475
        %v1579 = vsub.f32 %v738, %v1479
        %v1580 = vsub.f32 %v742, %v1475
        %v1581 = vsub.f32 %v744, %v1479
        %v1582 = vsub.f32 %v748, %v1475
        %v1583 = vsub.f32 %v750, %v1479
        %v1584 = vsub.f32 %v754, %v1475
        %v1585 = vsub.f32 %v756, %v1479
        %v1586 = vsub.f32 %v760, %v1475
        %v1587 = vsub.f32 %v762, %v1479
        %v1588 = vsub.f32 %v766, %v1475
        %v1589 = vsub.f32 %v768, %v1479
        %v1590 = vsub.f32 %v772, %v1475
        %v1591 = vsub.f32 %v774, %v1479
        %v1592 = vsub.f32 %v778, %v1475
        %v1593 = vsub.f32 %v780, %v1479
        %v1594 = vsub.f32 %v784, %v1475
        %v1595 = vsub.f32 %v786, %v1479
        %v1596 = vsub.f32 %v790, %v1475
        %v1597 = vsub.f32 %v792, %v1479
        %v1598 = vsub.f32 %v796, %v1475
        %v1599 = vsub.f32 %v798, %v1479
        %v1600 = vsub.f32 %v802, %v1475
        %v1601 = vsub.f32 %v804, %v1479
        %v1602 = vsub.f32 %v808, %v1475
        %v1603 = vsub.f32 %v810, %v1479
        %v1604 = vsub.f32 %v814, %v1475
        %v1605 = vsub.f32 %v816, %v1479
        %v1606 = vsub.f32 %v820, %v1475
        %v1607 = vsub.f32 %v822, %v1479
        %v1608 = vsub.f32 %v826, %v1475
        %v1609 = vsub.f32 %v828, %v1479
        %v1610 = vmax.f32 %v1482, 0.0
        %v1611 = vmax.f32 %v1483, 0.0
        %v1612 = vmax.f32 %v1484, 0.0
        %v1613 = vmax.f32 %v1485, 0.0
        %v1614 = vmax.f32 %v1486, 0.0
        %v1615 = vmax.f32 %v1487, 0.0
        %v1616 = vmax.f32 %v1488, 0.0
        %v1617 = vmax.f32 %v1489, 0.0
        %v1618 = vmax.f32 %v1490, 0.0
        %v1619 = vmax.f32 %v1491, 0.0
        %v1620 = vmax.f32 %v1492, 0.0
        %v1621 = vmax.f32 %v1493, 0.0
        %v1622 = vmax.f32 %v1494, 0.0
        %v1623 = vmax.f32 %v1495, 0.0
        %v1624 = vmax.f32 %v1496, 0.0
        %v1625 = vmax.f32 %v1497, 0.0
        %v1626 = vmax.f32 %v1498, 0.0
        %v1627 = vmax.f32 %v1499, 0.0
        %v1628 = vmax.f32 %v1500, 0.0
        %v1629 = vmax.f32 %v1501, 0.0
        %v1630 = vmax.f32 %v1502, 0.0
        %v1631 = vmax.f32 %v1503, 0.0
        %v1632 = vmax.f32 %v1504, 0.0
        %v1633 = vmax.f32 %v1505, 0.0
        %v1634 = vmax.f32 %v1506, 0.0
        %v1635 = vmax.f32 %v1507, 0.0
        %v1636 = vmax.f32 %v1508, 0.0
        %v1637 = vmax.f32 %v1509, 0.0
        %v1638 = vmax.f32 %v1510, 0.0
        %v1639 = vmax.f32 %v1511, 0.0
        %v1640 = vmax.f32 %v1512, 0.0
        %v1641 = vmax.f32 %v1513, 0.0
        %v1642 = vmax.f32 %v1514, 0.0
        %v1643 = vmax.f32 %v1515, 0.0
        %v1644 = vmax.f32 %v1516, 0.0
        %v1645 = vmax.f32 %v1517, 0.0
        %v1646 = vmax.f32 %v1518, 0.0
        %v1647 = vmax.f32 %v1519, 0.0
        %v1648 = vmax.f32 %v1520, 0.0
        %v1649 = vmax.f32 %v1521, 0.0
        %v1650 = vmax.f32 %v1522, 0.0
        %v1651 = vmax.f32 %v1523, 0.0
        %v1652 = vmax.f32 %v1524, 0.0
        %v1653 = vmax.f32 %v1525, 0.0
        %v1654 = vmax.f32 %v1526, 0.0
        %v1655 = vmax.f32 %v1527, 0.0
        %v1656 = vmax.f32 %v1528, 0.0
        %v1657 = vmax.f32 %v1529, 0.0
        %v1658 = vmax.f32 %v1530, 0.0
        %v1659 = vmax.f32 %v1531, 0.0
        %v1660 = vmax.f32 %v1532, 0.0
        %v1661 = vmax.f32 %v1533, 0.0
        %v1662 = vmax.f32 %v1534, 0.0
        %v1663 = vmax.f32 %v1535, 0.0
        %v1664 = vmax.f32 %v1536, 0.0
        %v1665 = vmax.f32 %v1537, 0.0
        %v1666 = vmax.f32 %v1538, 0.0
        %v1667 = vmax.f32 %v1539, 0.0
        %v1668 = vmax.f32 %v1540, 0.0
        %v1669 = vmax.f32 %v1541, 0.0
        %v1670 = vmax.f32 %v1542, 0.0
        %v1671 = vmax.f32 %v1543, 0.0
        %v1672 = vmax.f32 %v1544, 0.0
        %v1673 = vmax.f32 %v1545, 0.0
        %v1674 = vmax.f32 %v1546, 0.0
        %v1675 = vmax.f32 %v1547, 0.0
        %v1676 = vmax.f32 %v1548, 0.0
        %v1677 = vmax.f32 %v1549, 0.0
        %v1678 = vmax.f32 %v1550, 0.0
        %v1679 = vmax.f32 %v1551, 0.0
        %v1680 = vmax.f32 %v1552, 0.0
        %v1681 = vmax.f32 %v1553, 0.0
        %v1682 = vmax.f32 %v1554, 0.0
        %v1683 = vmax.f32 %v1555, 0.0
        %v1684 = vmax.f32 %v1556, 0.0
        %v1685 = vmax.f32 %v1557, 0.0
        %v1686 = vmax.f32 %v1558, 0.0
        %v1687 = vmax.f32 %v1559, 0.0
        %v1688 = vmax.f32 %v1560, 0.0
        %v1689 = vmax.f32 %v1561, 0.0
        %v1690 = vmax.f32 %v1562, 0.0
        %v1691 = vmax.f32 %v1563, 0.0
        %v1692 = vmax.f32 %v1564, 0.0
        %v1693 = vmax.f32 %v1565, 0.0
        %v1694 = vmax.f32 %v1566, 0.0
        %v1695 = vmax.f32 %v1567, 0.0
        %v1696 = vmax.f32 %v1568, 0.0
        %v1697 = vmax.f32 %v1569, 0.0
        %v1698 = vmax.f32 %v1570, 0.0
        %v1699 = vmax.f32 %v1571, 0.0
        %v1700 = vmax.f32 %v1572, 0.0
        %v1701 = vmax.f32 %v1573, 0.0
        %v1702 = vmax.f32 %v1574, 0.0
        %v1703 = vmax.f32 %v1575, 0.0
        %v1704 = vmax.f32 %v1576, 0.0
        %v1705 = vmax.f32 %v1577, 0.0
        %v1706 = vmax.f32 %v1578, 0.0
        %v1707 = vmax.f32 %v1579, 0.0
        %v1708 = vmax.f32 %v1580, 0.0
        %v1709 = vmax.f32 %v1581, 0.0
        %v1710 = vmax.f32 %v1582, 0.0
        %v1711 = vmax.f32 %v1583, 0.0
        %v1712 = vmax.f32 %v1584, 0.0
        %v1713 = vmax.f32 %v1585, 0.0
        %v1714 = vmax.f32 %v1586, 0.0
        %v1715 = vmax.f32 %v1587, 0.0
        %v1716 = vmax.f32 %v1588, 0.0
        %v1717 = vmax.f32 %v1589, 0.0
        %v1718 = vmax.f32 %v1590, 0.0
        %v1719 = vmax.f32 %v1591, 0.0
        %v1720 = vmax.f32 %v1592, 0.0
        %v1721 = vmax.f32 %v1593, 0.0
        %v1722 = vmax.f32 %v1594, 0.0
        %v1723 = vmax.f32 %v1595, 0.0
        %v1724 = vmax.f32 %v1596, 0.0
        %v1725 = vmax.f32 %v1597, 0.0
        %v1726 = vmax.f32 %v1598, 0.0
        %v1727 = vmax.f32 %v1599, 0.0
        %v1728 = vmax.f32 %v1600, 0.0
        %v1729 = vmax.f32 %v1601, 0.0
        %v1730 = vmax.f32 %v1602, 0.0
        %v1731 = vmax.f32 %v1603, 0.0
        %v1732 = vmax.f32 %v1604, 0.0
        %v1733 = vmax.f32 %v1605, 0.0
        %v1734 = vmax.f32 %v1606, 0.0
        %v1735 = vmax.f32 %v1607, 0.0
        %v1736 = vmax.f32 %v1608, 0.0
        %v1737 = vmax.f32 %v1609, 0.0
        %s1738 = smul.u32 %s23, 512
        %v1739 = vlaneseq
        %v1740 = vshrl.u32 %v1739, 7
        %v1741 = vadd.s32 %v1740, 8
        %v1742 = vadd.s32 %v1740, 16
        %v1743 = vadd.s32 %v1740, 24
        %v1744 = vadd.s32 %v1740, 32
        %v1745 = vadd.s32 %v1740, 40
        %v1746 = vadd.s32 %v1740, 48
        %v1747 = vadd.s32 %v1740, 56
        %v1748 = vadd.s32 %v1740, 64
        %v1749 = vadd.s32 %v1740, 72
        %v1750 = vadd.s32 %v1740, 80
        %v1751 = vadd.s32 %v1740, 88
        %v1752 = vadd.s32 %v1740, 96
        %v1753 = vadd.s32 %v1740, 104
        %v1754 = vadd.s32 %v1740, 112
        %v1755 = vadd.s32 %v1740, 120
        %v1756 = vadd.s32 %v1740, 128
        %v1757 = vadd.s32 %v1740, 136
        %v1758 = vadd.s32 %v1740, 144
        %v1759 = vadd.s32 %v1740, 152
        %v1760 = vadd.s32 %v1740, 160
        %v1761 = vadd.s32 %v1740, 168
        %v1762 = vadd.s32 %v1740, 176
        %v1763 = vadd.s32 %v1740, 184
        %v1764 = vadd.s32 %v1740, 192
        %v1765 = vadd.s32 %v1740, 200
        %v1766 = vadd.s32 %v1740, 208
        %v1767 = vadd.s32 %v1740, 216
        %v1768 = vadd.s32 %v1740, 224
        %v1769 = vadd.s32 %v1740, 232
        %v1770 = vadd.s32 %v1740, 240
        %v1771 = vadd.s32 %v1740, 248
        %v1772 = vadd.s32 %v1740, 256
        %v1773 = vadd.s32 %v1740, 264
        %v1774 = vadd.s32 %v1740, 272
        %v1775 = vadd.s32 %v1740, 280
        %v1776 = vadd.s32 %v1740, 288
        %v1777 = vadd.s32 %v1740, 296
        %v1778 = vadd.s32 %v1740, 304
        %v1779 = vadd.s32 %v1740, 312
        %v1780 = vadd.s32 %v1740, 320
        %v1781 = vadd.s32 %v1740, 328
        %v1782 = vadd.s32 %v1740, 336
        %v1783 = vadd.s32 %v1740, 344
        %v1784 = vadd.s32 %v1740, 352
        %v1785 = vadd.s32 %v1740, 360
        %v1786 = vadd.s32 %v1740, 368
        %v1787 = vadd.s32 %v1740, 376
        %v1788 = vadd.s32 %v1740, 384
        %v1789 = vadd.s32 %v1740, 392
        %v1790 = vadd.s32 %v1740, 400
        %v1791 = vadd.s32 %v1740, 408
        %v1792 = vadd.s32 %v1740, 416
        %v1793 = vadd.s32 %v1740, 424
        %v1794 = vadd.s32 %v1740, 432
        %v1795 = vadd.s32 %v1740, 440
        %v1796 = vadd.s32 %v1740, 448
        %v1797 = vadd.s32 %v1740, 456
        %v1798 = vadd.s32 %v1740, 464
        %v1799 = vadd.s32 %v1740, 472
        %v1800 = vadd.s32 %v1740, 480
        %v1801 = vadd.s32 %v1740, 488
        %v1802 = vadd.s32 %v1740, 496
        %v1803 = vadd.s32 %v1740, 504
        %v1804 = vstv %s1738
        %v1805 = vadd.s32 %v1804, %v1740
        %v1806 = vadd.s32 %v1804, %v1741
        %v1807 = vadd.s32 %v1804, %v1742
        %v1808 = vadd.s32 %v1804, %v1743
        %v1809 = vadd.s32 %v1804, %v1744
        %v1810 = vadd.s32 %v1804, %v1745
        %v1811 = vadd.s32 %v1804, %v1746
        %v1812 = vadd.s32 %v1804, %v1747
        %v1813 = vadd.s32 %v1804, %v1748
        %v1814 = vadd.s32 %v1804, %v1749
        %v1815 = vadd.s32 %v1804, %v1750
        %v1816 = vadd.s32 %v1804, %v1751
        %v1817 = vadd.s32 %v1804, %v1752
        %v1818 = vadd.s32 %v1804, %v1753
        %v1819 = vadd.s32 %v1804, %v1754
        %v1820 = vadd.s32 %v1804, %v1755
        %v1821 = vadd.s32 %v1804, %v1756
        %v1822 = vadd.s32 %v1804, %v1757
        %v1823 = vadd.s32 %v1804, %v1758
        %v1824 = vadd.s32 %v1804, %v1759
        %v1825 = vadd.s32 %v1804, %v1760
        %v1826 = vadd.s32 %v1804, %v1761
        %v1827 = vadd.s32 %v1804, %v1762
        %v1828 = vadd.s32 %v1804, %v1763
        %v1829 = vadd.s32 %v1804, %v1764
        %v1830 = vadd.s32 %v1804, %v1765
        %v1831 = vadd.s32 %v1804, %v1766
        %v1832 = vadd.s32 %v1804, %v1767
        %v1833 = vadd.s32 %v1804, %v1768
        %v1834 = vadd.s32 %v1804, %v1769
        %v1835 = vadd.s32 %v1804, %v1770
        %v1836 = vadd.s32 %v1804, %v1771
        %v1837 = vadd.s32 %v1804, %v1772
        %v1838 = vadd.s32 %v1804, %v1773
        %v1839 = vadd.s32 %v1804, %v1774
        %v1840 = vadd.s32 %v1804, %v1775
        %v1841 = vadd.s32 %v1804, %v1776
        %v1842 = vadd.s32 %v1804, %v1777
        %v1843 = vadd.s32 %v1804, %v1778
        %v1844 = vadd.s32 %v1804, %v1779
        %v1845 = vadd.s32 %v1804, %v1780
        %v1846 = vadd.s32 %v1804, %v1781
        %v1847 = vadd.s32 %v1804, %v1782
        %v1848 = vadd.s32 %v1804, %v1783
        %v1849 = vadd.s32 %v1804, %v1784
        %v1850 = vadd.s32 %v1804, %v1785
        %v1851 = vadd.s32 %v1804, %v1786
        %v1852 = vadd.s32 %v1804, %v1787
        %v1853 = vadd.s32 %v1804, %v1788
        %v1854 = vadd.s32 %v1804, %v1789
        %v1855 = vadd.s32 %v1804, %v1790
        %v1856 = vadd.s32 %v1804, %v1791
        %v1857 = vadd.s32 %v1804, %v1792
        %v1858 = vadd.s32 %v1804, %v1793
        %v1859 = vadd.s32 %v1804, %v1794
        %v1860 = vadd.s32 %v1804, %v1795
        %v1861 = vadd.s32 %v1804, %v1796
        %v1862 = vadd.s32 %v1804, %v1797
        %v1863 = vadd.s32 %v1804, %v1798
        %v1864 = vadd.s32 %v1804, %v1799
        %v1865 = vadd.s32 %v1804, %v1800
        %v1866 = vadd.s32 %v1804, %v1801
        %v1867 = vadd.s32 %v1804, %v1802
        %v1868 = vadd.s32 %v1804, %v1803
        %s1869 = smul.u32 %s24, 256
        %v1870 = vlaneseq
        %v1871 = vand.u32 %v1870, 127
        %v1872 = vadd.s32 %v1871, 128
        %v1873 = vstv %s1869
        %v1874 = vadd.s32 %v1873, %v1871
        %v1875 = vadd.s32 %v1873, %v1872
        %vm1876 = vcmp.ne.s32.totalorder %v1805, %v1874
        %vm1877 = vcmp.ne.s32.totalorder %v1805, %v1875
        %vm1878 = vcmp.ne.s32.totalorder %v1806, %v1874
        %vm1879 = vcmp.ne.s32.totalorder %v1806, %v1875
        %vm1880 = vcmp.ne.s32.totalorder %v1807, %v1874
        %vm1881 = vcmp.ne.s32.totalorder %v1807, %v1875
        %vm1882 = vcmp.ne.s32.totalorder %v1808, %v1874
        %vm1883 = vcmp.ne.s32.totalorder %v1808, %v1875
        %vm1884 = vcmp.ne.s32.totalorder %v1809, %v1874
        %vm1885 = vcmp.ne.s32.totalorder %v1809, %v1875
        %vm1886 = vcmp.ne.s32.totalorder %v1810, %v1874
        %vm1887 = vcmp.ne.s32.totalorder %v1810, %v1875
        %vm1888 = vcmp.ne.s32.totalorder %v1811, %v1874
        %vm1889 = vcmp.ne.s32.totalorder %v1811, %v1875
        %vm1890 = vcmp.ne.s32.totalorder %v1812, %v1874
        %vm1891 = vcmp.ne.s32.totalorder %v1812, %v1875
        %vm1892 = vcmp.ne.s32.totalorder %v1813, %v1874
        %vm1893 = vcmp.ne.s32.totalorder %v1813, %v1875
        %vm1894 = vcmp.ne.s32.totalorder %v1814, %v1874
        %vm1895 = vcmp.ne.s32.totalorder %v1814, %v1875
        %vm1896 = vcmp.ne.s32.totalorder %v1815, %v1874
        %vm1897 = vcmp.ne.s32.totalorder %v1815, %v1875
        %vm1898 = vcmp.ne.s32.totalorder %v1816, %v1874
        %vm1899 = vcmp.ne.s32.totalorder %v1816, %v1875
        %vm1900 = vcmp.ne.s32.totalorder %v1817, %v1874
        %vm1901 = vcmp.ne.s32.totalorder %v1817, %v1875
        %vm1902 = vcmp.ne.s32.totalorder %v1818, %v1874
        %vm1903 = vcmp.ne.s32.totalorder %v1818, %v1875
        %vm1904 = vcmp.ne.s32.totalorder %v1819, %v1874
        %vm1905 = vcmp.ne.s32.totalorder %v1819, %v1875
        %vm1906 = vcmp.ne.s32.totalorder %v1820, %v1874
        %vm1907 = vcmp.ne.s32.totalorder %v1820, %v1875
        %vm1908 = vcmp.ne.s32.totalorder %v1821, %v1874
        %vm1909 = vcmp.ne.s32.totalorder %v1821, %v1875
        %vm1910 = vcmp.ne.s32.totalorder %v1822, %v1874
        %vm1911 = vcmp.ne.s32.totalorder %v1822, %v1875
        %vm1912 = vcmp.ne.s32.totalorder %v1823, %v1874
        %vm1913 = vcmp.ne.s32.totalorder %v1823, %v1875
        %vm1914 = vcmp.ne.s32.totalorder %v1824, %v1874
        %vm1915 = vcmp.ne.s32.totalorder %v1824, %v1875
        %vm1916 = vcmp.ne.s32.totalorder %v1825, %v1874
        %vm1917 = vcmp.ne.s32.totalorder %v1825, %v1875
        %vm1918 = vcmp.ne.s32.totalorder %v1826, %v1874
        %vm1919 = vcmp.ne.s32.totalorder %v1826, %v1875
        %vm1920 = vcmp.ne.s32.totalorder %v1827, %v1874
        %vm1921 = vcmp.ne.s32.totalorder %v1827, %v1875
        %vm1922 = vcmp.ne.s32.totalorder %v1828, %v1874
        %vm1923 = vcmp.ne.s32.totalorder %v1828, %v1875
        %vm1924 = vcmp.ne.s32.totalorder %v1829, %v1874
        %vm1925 = vcmp.ne.s32.totalorder %v1829, %v1875
        %vm1926 = vcmp.ne.s32.totalorder %v1830, %v1874
        %vm1927 = vcmp.ne.s32.totalorder %v1830, %v1875
        %vm1928 = vcmp.ne.s32.totalorder %v1831, %v1874
        %vm1929 = vcmp.ne.s32.totalorder %v1831, %v1875
        %vm1930 = vcmp.ne.s32.totalorder %v1832, %v1874
        %vm1931 = vcmp.ne.s32.totalorder %v1832, %v1875
        %vm1932 = vcmp.ne.s32.totalorder %v1833, %v1874
        %vm1933 = vcmp.ne.s32.totalorder %v1833, %v1875
        %vm1934 = vcmp.ne.s32.totalorder %v1834, %v1874
        %vm1935 = vcmp.ne.s32.totalorder %v1834, %v1875
        %vm1936 = vcmp.ne.s32.totalorder %v1835, %v1874
        %vm1937 = vcmp.ne.s32.totalorder %v1835, %v1875
        %vm1938 = vcmp.ne.s32.totalorder %v1836, %v1874
        %vm1939 = vcmp.ne.s32.totalorder %v1836, %v1875
        %vm1940 = vcmp.ne.s32.totalorder %v1837, %v1874
        %vm1941 = vcmp.ne.s32.totalorder %v1837, %v1875
        %vm1942 = vcmp.ne.s32.totalorder %v1838, %v1874
        %vm1943 = vcmp.ne.s32.totalorder %v1838, %v1875
        %vm1944 = vcmp.ne.s32.totalorder %v1839, %v1874
        %vm1945 = vcmp.ne.s32.totalorder %v1839, %v1875
        %vm1946 = vcmp.ne.s32.totalorder %v1840, %v1874
        %vm1947 = vcmp.ne.s32.totalorder %v1840, %v1875
        %vm1948 = vcmp.ne.s32.totalorder %v1841, %v1874
        %vm1949 = vcmp.ne.s32.totalorder %v1841, %v1875
        %vm1950 = vcmp.ne.s32.totalorder %v1842, %v1874
        %vm1951 = vcmp.ne.s32.totalorder %v1842, %v1875
        %vm1952 = vcmp.ne.s32.totalorder %v1843, %v1874
        %vm1953 = vcmp.ne.s32.totalorder %v1843, %v1875
        %vm1954 = vcmp.ne.s32.totalorder %v1844, %v1874
        %vm1955 = vcmp.ne.s32.totalorder %v1844, %v1875
        %vm1956 = vcmp.ne.s32.totalorder %v1845, %v1874
        %vm1957 = vcmp.ne.s32.totalorder %v1845, %v1875
        %vm1958 = vcmp.ne.s32.totalorder %v1846, %v1874
        %vm1959 = vcmp.ne.s32.totalorder %v1846, %v1875
        %vm1960 = vcmp.ne.s32.totalorder %v1847, %v1874
        %vm1961 = vcmp.ne.s32.totalorder %v1847, %v1875
        %vm1962 = vcmp.ne.s32.totalorder %v1848, %v1874
        %vm1963 = vcmp.ne.s32.totalorder %v1848, %v1875
        %vm1964 = vcmp.ne.s32.totalorder %v1849, %v1874
        %vm1965 = vcmp.ne.s32.totalorder %v1849, %v1875
        %vm1966 = vcmp.ne.s32.totalorder %v1850, %v1874
        %vm1967 = vcmp.ne.s32.totalorder %v1850, %v1875
        %vm1968 = vcmp.ne.s32.totalorder %v1851, %v1874
        %vm1969 = vcmp.ne.s32.totalorder %v1851, %v1875
        %vm1970 = vcmp.ne.s32.totalorder %v1852, %v1874
        %vm1971 = vcmp.ne.s32.totalorder %v1852, %v1875
        %vm1972 = vcmp.ne.s32.totalorder %v1853, %v1874
        %vm1973 = vcmp.ne.s32.totalorder %v1853, %v1875
        %vm1974 = vcmp.ne.s32.totalorder %v1854, %v1874
        %vm1975 = vcmp.ne.s32.totalorder %v1854, %v1875
        %vm1976 = vcmp.ne.s32.totalorder %v1855, %v1874
        %vm1977 = vcmp.ne.s32.totalorder %v1855, %v1875
        %vm1978 = vcmp.ne.s32.totalorder %v1856, %v1874
        %vm1979 = vcmp.ne.s32.totalorder %v1856, %v1875
        %vm1980 = vcmp.ne.s32.totalorder %v1857, %v1874
        %vm1981 = vcmp.ne.s32.totalorder %v1857, %v1875
        %vm1982 = vcmp.ne.s32.totalorder %v1858, %v1874
        %vm1983 = vcmp.ne.s32.totalorder %v1858, %v1875
        %vm1984 = vcmp.ne.s32.totalorder %v1859, %v1874
        %vm1985 = vcmp.ne.s32.totalorder %v1859, %v1875
        %vm1986 = vcmp.ne.s32.totalorder %v1860, %v1874
        %vm1987 = vcmp.ne.s32.totalorder %v1860, %v1875
        %vm1988 = vcmp.ne.s32.totalorder %v1861, %v1874
        %vm1989 = vcmp.ne.s32.totalorder %v1861, %v1875
        %vm1990 = vcmp.ne.s32.totalorder %v1862, %v1874
        %vm1991 = vcmp.ne.s32.totalorder %v1862, %v1875
        %vm1992 = vcmp.ne.s32.totalorder %v1863, %v1874
        %vm1993 = vcmp.ne.s32.totalorder %v1863, %v1875
        %vm1994 = vcmp.ne.s32.totalorder %v1864, %v1874
        %vm1995 = vcmp.ne.s32.totalorder %v1864, %v1875
        %vm1996 = vcmp.ne.s32.totalorder %v1865, %v1874
        %vm1997 = vcmp.ne.s32.totalorder %v1865, %v1875
        %vm1998 = vcmp.ne.s32.totalorder %v1866, %v1874
        %vm1999 = vcmp.ne.s32.totalorder %v1866, %v1875
        %vm2000 = vcmp.ne.s32.totalorder %v1867, %v1874
        %vm2001 = vcmp.ne.s32.totalorder %v1867, %v1875
        %vm2002 = vcmp.ne.s32.totalorder %v1868, %v1874
        %vm2003 = vcmp.ne.s32.totalorder %v1868, %v1875
        %v2004 = vsel %vm1876, %v1342, 0.0
        %v2005 = vsel %vm1877, %v1343, 0.0
        %v2006 = vsel %vm1878, %v1344, 0.0
        %v2007 = vsel %vm1879, %v1345, 0.0
        %v2008 = vsel %vm1880, %v1346, 0.0
        %v2009 = vsel %vm1881, %v1347, 0.0
        %v2010 = vsel %vm1882, %v1348, 0.0
        %v2011 = vsel %vm1883, %v1349, 0.0
        %v2012 = vsel %vm1884, %v1350, 0.0
        %v2013 = vsel %vm1885, %v1351, 0.0
        %v2014 = vsel %vm1886, %v1352, 0.0
        %v2015 = vsel %vm1887, %v1353, 0.0
        %v2016 = vsel %vm1888, %v1354, 0.0
        %v2017 = vsel %vm1889, %v1355, 0.0
        %v2018 = vsel %vm1890, %v1356, 0.0
        %v2019 = vsel %vm1891, %v1357, 0.0
        %v2020 = vsel %vm1892, %v1358, 0.0
        %v2021 = vsel %vm1893, %v1359, 0.0
        %v2022 = vsel %vm1894, %v1360, 0.0
        %v2023 = vsel %vm1895, %v1361, 0.0
        %v2024 = vsel %vm1896, %v1362, 0.0
        %v2025 = vsel %vm1897, %v1363, 0.0
        %v2026 = vsel %vm1898, %v1364, 0.0
        %v2027 = vsel %vm1899, %v1365, 0.0
        %v2028 = vsel %vm1900, %v1366, 0.0
        %v2029 = vsel %vm1901, %v1367, 0.0
        %v2030 = vsel %vm1902, %v1368, 0.0
        %v2031 = vsel %vm1903, %v1369, 0.0
        %v2032 = vsel %vm1904, %v1370, 0.0
        %v2033 = vsel %vm1905, %v1371, 0.0
        %v2034 = vsel %vm1906, %v1372, 0.0
        %v2035 = vsel %vm1907, %v1373, 0.0
        %v2036 = vsel %vm1908, %v1374, 0.0
        %v2037 = vsel %vm1909, %v1375, 0.0
        %v2038 = vsel %vm1910, %v1376, 0.0
        %v2039 = vsel %vm1911, %v1377, 0.0
        %v2040 = vsel %vm1912, %v1378, 0.0
        %v2041 = vsel %vm1913, %v1379, 0.0
        %v2042 = vsel %vm1914, %v1380, 0.0
        %v2043 = vsel %vm1915, %v1381, 0.0
        %v2044 = vsel %vm1916, %v1382, 0.0
        %v2045 = vsel %vm1917, %v1383, 0.0
        %v2046 = vsel %vm1918, %v1384, 0.0
        %v2047 = vsel %vm1919, %v1385, 0.0
        %v2048 = vsel %vm1920, %v1386, 0.0
        %v2049 = vsel %vm1921, %v1387, 0.0
        %v2050 = vsel %vm1922, %v1388, 0.0
        %v2051 = vsel %vm1923, %v1389, 0.0
        %v2052 = vsel %vm1924, %v1390, 0.0
        %v2053 = vsel %vm1925, %v1391, 0.0
        %v2054 = vsel %vm1926, %v1392, 0.0
        %v2055 = vsel %vm1927, %v1393, 0.0
        %v2056 = vsel %vm1928, %v1394, 0.0
        %v2057 = vsel %vm1929, %v1395, 0.0
        %v2058 = vsel %vm1930, %v1396, 0.0
        %v2059 = vsel %vm1931, %v1397, 0.0
        %v2060 = vsel %vm1932, %v1398, 0.0
        %v2061 = vsel %vm1933, %v1399, 0.0
        %v2062 = vsel %vm1934, %v1400, 0.0
        %v2063 = vsel %vm1935, %v1401, 0.0
        %v2064 = vsel %vm1936, %v1402, 0.0
        %v2065 = vsel %vm1937, %v1403, 0.0
        %v2066 = vsel %vm1938, %v1404, 0.0
        %v2067 = vsel %vm1939, %v1405, 0.0
        %v2068 = vsel %vm1940, %v1406, 0.0
        %v2069 = vsel %vm1941, %v1407, 0.0
        %v2070 = vsel %vm1942, %v1408, 0.0
        %v2071 = vsel %vm1943, %v1409, 0.0
        %v2072 = vsel %vm1944, %v1410, 0.0
        %v2073 = vsel %vm1945, %v1411, 0.0
        %v2074 = vsel %vm1946, %v1412, 0.0
        %v2075 = vsel %vm1947, %v1413, 0.0
        %v2076 = vsel %vm1948, %v1414, 0.0
        %v2077 = vsel %vm1949, %v1415, 0.0
        %v2078 = vsel %vm1950, %v1416, 0.0
        %v2079 = vsel %vm1951, %v1417, 0.0
        %v2080 = vsel %vm1952, %v1418, 0.0
        %v2081 = vsel %vm1953, %v1419, 0.0
        %v2082 = vsel %vm1954, %v1420, 0.0
        %v2083 = vsel %vm1955, %v1421, 0.0
        %v2084 = vsel %vm1956, %v1422, 0.0
        %v2085 = vsel %vm1957, %v1423, 0.0
        %v2086 = vsel %vm1958, %v1424, 0.0
        %v2087 = vsel %vm1959, %v1425, 0.0
        %v2088 = vsel %vm1960, %v1426, 0.0
        %v2089 = vsel %vm1961, %v1427, 0.0
        %v2090 = vsel %vm1962, %v1428, 0.0
        %v2091 = vsel %vm1963, %v1429, 0.0
        %v2092 = vsel %vm1964, %v1430, 0.0
        %v2093 = vsel %vm1965, %v1431, 0.0
        %v2094 = vsel %vm1966, %v1432, 0.0
        %v2095 = vsel %vm1967, %v1433, 0.0
        %v2096 = vsel %vm1968, %v1434, 0.0
        %v2097 = vsel %vm1969, %v1435, 0.0
        %v2098 = vsel %vm1970, %v1436, 0.0
        %v2099 = vsel %vm1971, %v1437, 0.0
        %v2100 = vsel %vm1972, %v1438, 0.0
        %v2101 = vsel %vm1973, %v1439, 0.0
        %v2102 = vsel %vm1974, %v1440, 0.0
        %v2103 = vsel %vm1975, %v1441, 0.0
        %v2104 = vsel %vm1976, %v1442, 0.0
        %v2105 = vsel %vm1977, %v1443, 0.0
        %v2106 = vsel %vm1978, %v1444, 0.0
        %v2107 = vsel %vm1979, %v1445, 0.0
        %v2108 = vsel %vm1980, %v1446, 0.0
        %v2109 = vsel %vm1981, %v1447, 0.0
        %v2110 = vsel %vm1982, %v1448, 0.0
        %v2111 = vsel %vm1983, %v1449, 0.0
        %v2112 = vsel %vm1984, %v1450, 0.0
        %v2113 = vsel %vm1985, %v1451, 0.0
        %v2114 = vsel %vm1986, %v1452, 0.0
        %v2115 = vsel %vm1987, %v1453, 0.0
        %v2116 = vsel %vm1988, %v1454, 0.0
        %v2117 = vsel %vm1989, %v1455, 0.0
        %v2118 = vsel %vm1990, %v1456, 0.0
        %v2119 = vsel %vm1991, %v1457, 0.0
        %v2120 = vsel %vm1992, %v1458, 0.0
        %v2121 = vsel %vm1993, %v1459, 0.0
        %v2122 = vsel %vm1994, %v1460, 0.0
        %v2123 = vsel %vm1995, %v1461, 0.0
        %v2124 = vsel %vm1996, %v1462, 0.0
        %v2125 = vsel %vm1997, %v1463, 0.0
        %v2126 = vsel %vm1998, %v1464, 0.0
        %v2127 = vsel %vm1999, %v1465, 0.0
        %v2128 = vsel %vm2000, %v1466, 0.0
        %v2129 = vsel %vm2001, %v1467, 0.0
        %v2130 = vsel %vm2002, %v1468, 0.0
        %v2131 = vsel %vm2003, %v1469, 0.0
        %v2132 = vsel %vm1876, %v1610, 0.0
        %v2133 = vsel %vm1877, %v1611, 0.0
        %v2134 = vsel %vm1878, %v1612, 0.0
        %v2135 = vsel %vm1879, %v1613, 0.0
        %v2136 = vsel %vm1880, %v1614, 0.0
        %v2137 = vsel %vm1881, %v1615, 0.0
        %v2138 = vsel %vm1882, %v1616, 0.0
        %v2139 = vsel %vm1883, %v1617, 0.0
        %v2140 = vsel %vm1884, %v1618, 0.0
        %v2141 = vsel %vm1885, %v1619, 0.0
        %v2142 = vsel %vm1886, %v1620, 0.0
        %v2143 = vsel %vm1887, %v1621, 0.0
        %v2144 = vsel %vm1888, %v1622, 0.0
        %v2145 = vsel %vm1889, %v1623, 0.0
        %v2146 = vsel %vm1890, %v1624, 0.0
        %v2147 = vsel %vm1891, %v1625, 0.0
        %v2148 = vsel %vm1892, %v1626, 0.0
        %v2149 = vsel %vm1893, %v1627, 0.0
        %v2150 = vsel %vm1894, %v1628, 0.0
        %v2151 = vsel %vm1895, %v1629, 0.0
        %v2152 = vsel %vm1896, %v1630, 0.0
        %v2153 = vsel %vm1897, %v1631, 0.0
        %v2154 = vsel %vm1898, %v1632, 0.0
        %v2155 = vsel %vm1899, %v1633, 0.0
        %v2156 = vsel %vm1900, %v1634, 0.0
        %v2157 = vsel %vm1901, %v1635, 0.0
        %v2158 = vsel %vm1902, %v1636, 0.0
        %v2159 = vsel %vm1903, %v1637, 0.0
        %v2160 = vsel %vm1904, %v1638, 0.0
        %v2161 = vsel %vm1905, %v1639, 0.0
        %v2162 = vsel %vm1906, %v1640, 0.0
        %v2163 = vsel %vm1907, %v1641, 0.0
        %v2164 = vsel %vm1908, %v1642, 0.0
        %v2165 = vsel %vm1909, %v1643, 0.0
        %v2166 = vsel %vm1910, %v1644, 0.0
        %v2167 = vsel %vm1911, %v1645, 0.0
        %v2168 = vsel %vm1912, %v1646, 0.0
        %v2169 = vsel %vm1913, %v1647, 0.0
        %v2170 = vsel %vm1914, %v1648, 0.0
        %v2171 = vsel %vm1915, %v1649, 0.0
        %v2172 = vsel %vm1916, %v1650, 0.0
        %v2173 = vsel %vm1917, %v1651, 0.0
        %v2174 = vsel %vm1918, %v1652, 0.0
        %v2175 = vsel %vm1919, %v1653, 0.0
        %v2176 = vsel %vm1920, %v1654, 0.0
        %v2177 = vsel %vm1921, %v1655, 0.0
        %v2178 = vsel %vm1922, %v1656, 0.0
        %v2179 = vsel %vm1923, %v1657, 0.0
        %v2180 = vsel %vm1924, %v1658, 0.0
        %v2181 = vsel %vm1925, %v1659, 0.0
        %v2182 = vsel %vm1926, %v1660, 0.0
        %v2183 = vsel %vm1927, %v1661, 0.0
        %v2184 = vsel %vm1928, %v1662, 0.0
        %v2185 = vsel %vm1929, %v1663, 0.0
        %v2186 = vsel %vm1930, %v1664, 0.0
        %v2187 = vsel %vm1931, %v1665, 0.0
        %v2188 = vsel %vm1932, %v1666, 0.0
        %v2189 = vsel %vm1933, %v1667, 0.0
        %v2190 = vsel %vm1934, %v1668, 0.0
        %v2191 = vsel %vm1935, %v1669, 0.0
        %v2192 = vsel %vm1936, %v1670, 0.0
        %v2193 = vsel %vm1937, %v1671, 0.0
        %v2194 = vsel %vm1938, %v1672, 0.0
        %v2195 = vsel %vm1939, %v1673, 0.0
        %v2196 = vsel %vm1940, %v1674, 0.0
        %v2197 = vsel %vm1941, %v1675, 0.0
        %v2198 = vsel %vm1942, %v1676, 0.0
        %v2199 = vsel %vm1943, %v1677, 0.0
        %v2200 = vsel %vm1944, %v1678, 0.0
        %v2201 = vsel %vm1945, %v1679, 0.0
        %v2202 = vsel %vm1946, %v1680, 0.0
        %v2203 = vsel %vm1947, %v1681, 0.0
        %v2204 = vsel %vm1948, %v1682, 0.0
        %v2205 = vsel %vm1949, %v1683, 0.0
        %v2206 = vsel %vm1950, %v1684, 0.0
        %v2207 = vsel %vm1951, %v1685, 0.0
        %v2208 = vsel %vm1952, %v1686, 0.0
        %v2209 = vsel %vm1953, %v1687, 0.0
        %v2210 = vsel %vm1954, %v1688, 0.0
        %v2211 = vsel %vm1955, %v1689, 0.0
        %v2212 = vsel %vm1956, %v1690, 0.0
        %v2213 = vsel %vm1957, %v1691, 0.0
        %v2214 = vsel %vm1958, %v1692, 0.0
        %v2215 = vsel %vm1959, %v1693, 0.0
        %v2216 = vsel %vm1960, %v1694, 0.0
        %v2217 = vsel %vm1961, %v1695, 0.0
        %v2218 = vsel %vm1962, %v1696, 0.0
        %v2219 = vsel %vm1963, %v1697, 0.0
        %v2220 = vsel %vm1964, %v1698, 0.0
        %v2221 = vsel %vm1965, %v1699, 0.0
        %v2222 = vsel %vm1966, %v1700, 0.0
        %v2223 = vsel %vm1967, %v1701, 0.0
        %v2224 = vsel %vm1968, %v1702, 0.0
        %v2225 = vsel %vm1969, %v1703, 0.0
        %v2226 = vsel %vm1970, %v1704, 0.0
        %v2227 = vsel %vm1971, %v1705, 0.0
        %v2228 = vsel %vm1972, %v1706, 0.0
        %v2229 = vsel %vm1973, %v1707, 0.0
        %v2230 = vsel %vm1974, %v1708, 0.0
        %v2231 = vsel %vm1975, %v1709, 0.0
        %v2232 = vsel %vm1976, %v1710, 0.0
        %v2233 = vsel %vm1977, %v1711, 0.0
        %v2234 = vsel %vm1978, %v1712, 0.0
        %v2235 = vsel %vm1979, %v1713, 0.0
        %v2236 = vsel %vm1980, %v1714, 0.0
        %v2237 = vsel %vm1981, %v1715, 0.0
        %v2238 = vsel %vm1982, %v1716, 0.0
        %v2239 = vsel %vm1983, %v1717, 0.0
        %v2240 = vsel %vm1984, %v1718, 0.0
        %v2241 = vsel %vm1985, %v1719, 0.0
        %v2242 = vsel %vm1986, %v1720, 0.0
        %v2243 = vsel %vm1987, %v1721, 0.0
        %v2244 = vsel %vm1988, %v1722, 0.0
        %v2245 = vsel %vm1989, %v1723, 0.0
        %v2246 = vsel %vm1990, %v1724, 0.0
        %v2247 = vsel %vm1991, %v1725, 0.0
        %v2248 = vsel %vm1992, %v1726, 0.0
        %v2249 = vsel %vm1993, %v1727, 0.0
        %v2250 = vsel %vm1994, %v1728, 0.0
        %v2251 = vsel %vm1995, %v1729, 0.0
        %v2252 = vsel %vm1996, %v1730, 0.0
        %v2253 = vsel %vm1997, %v1731, 0.0
        %v2254 = vsel %vm1998, %v1732, 0.0
        %v2255 = vsel %vm1999, %v1733, 0.0
        %v2256 = vsel %vm2000, %v1734, 0.0
        %v2257 = vsel %vm2001, %v1735, 0.0
        %v2258 = vsel %vm2002, %v1736, 0.0
        %v2259 = vsel %vm2003, %v1737, 0.0
        %v2260 = vadd.f32 %v2004, %v2132
        %v2261 = vadd.f32 %v2005, %v2133
        %v2262 = vadd.f32 %v2006, %v2134
        %v2263 = vadd.f32 %v2007, %v2135
        %v2264 = vadd.f32 %v2008, %v2136
        %v2265 = vadd.f32 %v2009, %v2137
        %v2266 = vadd.f32 %v2010, %v2138
        %v2267 = vadd.f32 %v2011, %v2139
        %v2268 = vadd.f32 %v2012, %v2140
        %v2269 = vadd.f32 %v2013, %v2141
        %v2270 = vadd.f32 %v2014, %v2142
        %v2271 = vadd.f32 %v2015, %v2143
        %v2272 = vadd.f32 %v2016, %v2144
        %v2273 = vadd.f32 %v2017, %v2145
        %v2274 = vadd.f32 %v2018, %v2146
        %v2275 = vadd.f32 %v2019, %v2147
        %v2276 = vadd.f32 %v2020, %v2148
        %v2277 = vadd.f32 %v2021, %v2149
        %v2278 = vadd.f32 %v2022, %v2150
        %v2279 = vadd.f32 %v2023, %v2151
        %v2280 = vadd.f32 %v2024, %v2152
        %v2281 = vadd.f32 %v2025, %v2153
        %v2282 = vadd.f32 %v2026, %v2154
        %v2283 = vadd.f32 %v2027, %v2155
        %v2284 = vadd.f32 %v2028, %v2156
        %v2285 = vadd.f32 %v2029, %v2157
        %v2286 = vadd.f32 %v2030, %v2158
        %v2287 = vadd.f32 %v2031, %v2159
        %v2288 = vadd.f32 %v2032, %v2160
        %v2289 = vadd.f32 %v2033, %v2161
        %v2290 = vadd.f32 %v2034, %v2162
        %v2291 = vadd.f32 %v2035, %v2163
        %v2292 = vadd.f32 %v2036, %v2164
        %v2293 = vadd.f32 %v2037, %v2165
        %v2294 = vadd.f32 %v2038, %v2166
        %v2295 = vadd.f32 %v2039, %v2167
        %v2296 = vadd.f32 %v2040, %v2168
        %v2297 = vadd.f32 %v2041, %v2169
        %v2298 = vadd.f32 %v2042, %v2170
        %v2299 = vadd.f32 %v2043, %v2171
        %v2300 = vadd.f32 %v2044, %v2172
        %v2301 = vadd.f32 %v2045, %v2173
        %v2302 = vadd.f32 %v2046, %v2174
        %v2303 = vadd.f32 %v2047, %v2175
        %v2304 = vadd.f32 %v2048, %v2176
        %v2305 = vadd.f32 %v2049, %v2177
        %v2306 = vadd.f32 %v2050, %v2178
        %v2307 = vadd.f32 %v2051, %v2179
        %v2308 = vadd.f32 %v2052, %v2180
        %v2309 = vadd.f32 %v2053, %v2181
        %v2310 = vadd.f32 %v2054, %v2182
        %v2311 = vadd.f32 %v2055, %v2183
        %v2312 = vadd.f32 %v2056, %v2184
        %v2313 = vadd.f32 %v2057, %v2185
        %v2314 = vadd.f32 %v2058, %v2186
        %v2315 = vadd.f32 %v2059, %v2187
        %v2316 = vadd.f32 %v2060, %v2188
        %v2317 = vadd.f32 %v2061, %v2189
        %v2318 = vadd.f32 %v2062, %v2190
        %v2319 = vadd.f32 %v2063, %v2191
        %v2320 = vadd.f32 %v2064, %v2192
        %v2321 = vadd.f32 %v2065, %v2193
        %v2322 = vadd.f32 %v2066, %v2194
        %v2323 = vadd.f32 %v2067, %v2195
        %v2324 = vadd.f32 %v2068, %v2196
        %v2325 = vadd.f32 %v2069, %v2197
        %v2326 = vadd.f32 %v2070, %v2198
        %v2327 = vadd.f32 %v2071, %v2199
        %v2328 = vadd.f32 %v2072, %v2200
        %v2329 = vadd.f32 %v2073, %v2201
        %v2330 = vadd.f32 %v2074, %v2202
        %v2331 = vadd.f32 %v2075, %v2203
        %v2332 = vadd.f32 %v2076, %v2204
        %v2333 = vadd.f32 %v2077, %v2205
        %v2334 = vadd.f32 %v2078, %v2206
        %v2335 = vadd.f32 %v2079, %v2207
        %v2336 = vadd.f32 %v2080, %v2208
        %v2337 = vadd.f32 %v2081, %v2209
        %v2338 = vadd.f32 %v2082, %v2210
        %v2339 = vadd.f32 %v2083, %v2211
        %v2340 = vadd.f32 %v2084, %v2212
        %v2341 = vadd.f32 %v2085, %v2213
        %v2342 = vadd.f32 %v2086, %v2214
        %v2343 = vadd.f32 %v2087, %v2215
        %v2344 = vadd.f32 %v2088, %v2216
        %v2345 = vadd.f32 %v2089, %v2217
        %v2346 = vadd.f32 %v2090, %v2218
        %v2347 = vadd.f32 %v2091, %v2219
        %v2348 = vadd.f32 %v2092, %v2220
        %v2349 = vadd.f32 %v2093, %v2221
        %v2350 = vadd.f32 %v2094, %v2222
        %v2351 = vadd.f32 %v2095, %v2223
        %v2352 = vadd.f32 %v2096, %v2224
        %v2353 = vadd.f32 %v2097, %v2225
        %v2354 = vadd.f32 %v2098, %v2226
        %v2355 = vadd.f32 %v2099, %v2227
        %v2356 = vadd.f32 %v2100, %v2228
        %v2357 = vadd.f32 %v2101, %v2229
        %v2358 = vadd.f32 %v2102, %v2230
        %v2359 = vadd.f32 %v2103, %v2231
        %v2360 = vadd.f32 %v2104, %v2232
        %v2361 = vadd.f32 %v2105, %v2233
        %v2362 = vadd.f32 %v2106, %v2234
        %v2363 = vadd.f32 %v2107, %v2235
        %v2364 = vadd.f32 %v2108, %v2236
        %v2365 = vadd.f32 %v2109, %v2237
        %v2366 = vadd.f32 %v2110, %v2238
        %v2367 = vadd.f32 %v2111, %v2239
        %v2368 = vadd.f32 %v2112, %v2240
        %v2369 = vadd.f32 %v2113, %v2241
        %v2370 = vadd.f32 %v2114, %v2242
        %v2371 = vadd.f32 %v2115, %v2243
        %v2372 = vadd.f32 %v2116, %v2244
        %v2373 = vadd.f32 %v2117, %v2245
        %v2374 = vadd.f32 %v2118, %v2246
        %v2375 = vadd.f32 %v2119, %v2247
        %v2376 = vadd.f32 %v2120, %v2248
        %v2377 = vadd.f32 %v2121, %v2249
        %v2378 = vadd.f32 %v2122, %v2250
        %v2379 = vadd.f32 %v2123, %v2251
        %v2380 = vadd.f32 %v2124, %v2252
        %v2381 = vadd.f32 %v2125, %v2253
        %v2382 = vadd.f32 %v2126, %v2254
        %v2383 = vadd.f32 %v2127, %v2255
        %v2384 = vadd.f32 %v2128, %v2256
        %v2385 = vadd.f32 %v2129, %v2257
        %v2386 = vadd.f32 %v2130, %v2258
        %v2387 = vadd.f32 %v2131, %v2259
        %v2388 = vadd.f32 %v2260, %v2262
        %v2389 = vadd.f32 %v2388, %v2264
        %v2390 = vadd.f32 %v2389, %v2266
        %v2391 = vadd.f32 %v2390, %v2268
        %v2392 = vadd.f32 %v2391, %v2270
        %v2393 = vadd.f32 %v2392, %v2272
        %v2394 = vadd.f32 %v2393, %v2274
        %v2395 = vadd.f32 %v2394, %v2276
        %v2396 = vadd.f32 %v2395, %v2278
        %v2397 = vadd.f32 %v2396, %v2280
        %v2398 = vadd.f32 %v2397, %v2282
        %v2399 = vadd.f32 %v2398, %v2284
        %v2400 = vadd.f32 %v2399, %v2286
        %v2401 = vadd.f32 %v2400, %v2288
        %v2402 = vadd.f32 %v2401, %v2290
        %v2403 = vadd.f32 %v2402, %v2292
        %v2404 = vadd.f32 %v2403, %v2294
        %v2405 = vadd.f32 %v2404, %v2296
        %v2406 = vadd.f32 %v2405, %v2298
        %v2407 = vadd.f32 %v2406, %v2300
        %v2408 = vadd.f32 %v2407, %v2302
        %v2409 = vadd.f32 %v2408, %v2304
        %v2410 = vadd.f32 %v2409, %v2306
        %v2411 = vadd.f32 %v2410, %v2308
        %v2412 = vadd.f32 %v2411, %v2310
        %v2413 = vadd.f32 %v2412, %v2312
        %v2414 = vadd.f32 %v2413, %v2314
        %v2415 = vadd.f32 %v2414, %v2316
        %v2416 = vadd.f32 %v2415, %v2318
        %v2417 = vadd.f32 %v2416, %v2320
        %v2418 = vadd.f32 %v2417, %v2322
        %v2419 = vadd.f32 %v2418, %v2324
        %v2420 = vadd.f32 %v2419, %v2326
        %v2421 = vadd.f32 %v2420, %v2328
        %v2422 = vadd.f32 %v2421, %v2330
        %v2423 = vadd.f32 %v2422, %v2332
        %v2424 = vadd.f32 %v2423, %v2334
        %v2425 = vadd.f32 %v2424, %v2336
        %v2426 = vadd.f32 %v2425, %v2338
        %v2427 = vadd.f32 %v2426, %v2340
        %v2428 = vadd.f32 %v2427, %v2342
        %v2429 = vadd.f32 %v2428, %v2344
        %v2430 = vadd.f32 %v2429, %v2346
        %v2431 = vadd.f32 %v2430, %v2348
        %v2432 = vadd.f32 %v2431, %v2350
        %v2433 = vadd.f32 %v2432, %v2352
        %v2434 = vadd.f32 %v2433, %v2354
        %v2435 = vadd.f32 %v2434, %v2356
        %v2436 = vadd.f32 %v2435, %v2358
        %v2437 = vadd.f32 %v2436, %v2360
        %v2438 = vadd.f32 %v2437, %v2362
        %v2439 = vadd.f32 %v2438, %v2364
        %v2440 = vadd.f32 %v2439, %v2366
        %v2441 = vadd.f32 %v2440, %v2368
        %v2442 = vadd.f32 %v2441, %v2370
        %v2443 = vadd.f32 %v2442, %v2372
        %v2444 = vadd.f32 %v2443, %v2374
        %v2445 = vadd.f32 %v2444, %v2376
        %v2446 = vadd.f32 %v2445, %v2378
        %v2447 = vadd.f32 %v2446, %v2380
        %v2448 = vadd.f32 %v2447, %v2382
        %v2449 = vadd.f32 %v2448, %v2384
        %v2450 = vadd.f32 %v2449, %v2386
        %v2451 = vadd.f32 %v2261, %v2263
        %v2452 = vadd.f32 %v2451, %v2265
        %v2453 = vadd.f32 %v2452, %v2267
        %v2454 = vadd.f32 %v2453, %v2269
        %v2455 = vadd.f32 %v2454, %v2271
        %v2456 = vadd.f32 %v2455, %v2273
        %v2457 = vadd.f32 %v2456, %v2275
        %v2458 = vadd.f32 %v2457, %v2277
        %v2459 = vadd.f32 %v2458, %v2279
        %v2460 = vadd.f32 %v2459, %v2281
        %v2461 = vadd.f32 %v2460, %v2283
        %v2462 = vadd.f32 %v2461, %v2285
        %v2463 = vadd.f32 %v2462, %v2287
        %v2464 = vadd.f32 %v2463, %v2289
        %v2465 = vadd.f32 %v2464, %v2291
        %v2466 = vadd.f32 %v2465, %v2293
        %v2467 = vadd.f32 %v2466, %v2295
        %v2468 = vadd.f32 %v2467, %v2297
        %v2469 = vadd.f32 %v2468, %v2299
        %v2470 = vadd.f32 %v2469, %v2301
        %v2471 = vadd.f32 %v2470, %v2303
        %v2472 = vadd.f32 %v2471, %v2305
        %v2473 = vadd.f32 %v2472, %v2307
        %v2474 = vadd.f32 %v2473, %v2309
        %v2475 = vadd.f32 %v2474, %v2311
        %v2476 = vadd.f32 %v2475, %v2313
        %v2477 = vadd.f32 %v2476, %v2315
        %v2478 = vadd.f32 %v2477, %v2317
        %v2479 = vadd.f32 %v2478, %v2319
        %v2480 = vadd.f32 %v2479, %v2321
        %v2481 = vadd.f32 %v2480, %v2323
        %v2482 = vadd.f32 %v2481, %v2325
        %v2483 = vadd.f32 %v2482, %v2327
        %v2484 = vadd.f32 %v2483, %v2329
        %v2485 = vadd.f32 %v2484, %v2331
        %v2486 = vadd.f32 %v2485, %v2333
        %v2487 = vadd.f32 %v2486, %v2335
        %v2488 = vadd.f32 %v2487, %v2337
        %v2489 = vadd.f32 %v2488, %v2339
        %v2490 = vadd.f32 %v2489, %v2341
        %v2491 = vadd.f32 %v2490, %v2343
        %v2492 = vadd.f32 %v2491, %v2345
        %v2493 = vadd.f32 %v2492, %v2347
        %v2494 = vadd.f32 %v2493, %v2349
        %v2495 = vadd.f32 %v2494, %v2351
        %v2496 = vadd.f32 %v2495, %v2353
        %v2497 = vadd.f32 %v2496, %v2355
        %v2498 = vadd.f32 %v2497, %v2357
        %v2499 = vadd.f32 %v2498, %v2359
        %v2500 = vadd.f32 %v2499, %v2361
        %v2501 = vadd.f32 %v2500, %v2363
        %v2502 = vadd.f32 %v2501, %v2365
        %v2503 = vadd.f32 %v2502, %v2367
        %v2504 = vadd.f32 %v2503, %v2369
        %v2505 = vadd.f32 %v2504, %v2371
        %v2506 = vadd.f32 %v2505, %v2373
        %v2507 = vadd.f32 %v2506, %v2375
        %v2508 = vadd.f32 %v2507, %v2377
        %v2509 = vadd.f32 %v2508, %v2379
        %v2510 = vadd.f32 %v2509, %v2381
        %v2511 = vadd.f32 %v2510, %v2383
        %v2512 = vadd.f32 %v2511, %v2385
        %v2513 = vadd.f32 %v2512, %v2387
        %p2514 = scmp.eq.s32.totalorder %s24, 0
        // Predicated region
        $region41: #{tpu_custom_call.1} parent=35 // pred_check
          %p2515 = pneg %p2514
        $region42: #{tpu_custom_call.1} parent=35 // pred_check_branch
          %2517 = sbr.rel (%p2515) target = $region44
        $region43: #{tpu_custom_call.1} parent=35 // pred_region
          %2518 = vst [vmem:[#allocation5] sm:$0xff] %v2450
          %2519 = vst [vmem:[#allocation5 + $0x8] sm:$0xff] %v2513
        $region44: #{tpu_custom_call.1} parent=35 // pred_fallthru
          _
        %p2520 = scmp.gt.s32.totalorder %s24, 0
        // Predicated region
        $region45: #{tpu_custom_call.1} parent=35 // pred_check
          %p2521 = pneg %p2520
        $region46: #{tpu_custom_call.1} parent=35 // pred_check_branch
          %2523 = sbr.rel (%p2521) target = $region48
        $region47: #{tpu_custom_call.1} parent=35 // pred_region
          %v2524 = vld [vmem:[#allocation5] sm:$0xff]
          %v2525 = vld [vmem:[#allocation5 + $0x8] sm:$0xff]
          %v2526 = vadd.f32 %v2524, %v2450
          %v2527 = vadd.f32 %v2525, %v2513
          %2528 = vst [vmem:[#allocation5] sm:$0xff] %v2526
          %2529 = vst [vmem:[#allocation5 + $0x8] sm:$0xff] %v2527
        $region48: #{tpu_custom_call.1} parent=35 // pred_fallthru
          _
        // Predicated region
        $region49: #{tpu_custom_call.1} parent=35 // pred_check
          %p2530 = pneg %p153
        $region50: #{tpu_custom_call.1} parent=35 // pred_check_branch
          %2532 = sbr.rel (%p2530) target = $region52
        $region51: #{tpu_custom_call.1} parent=35 // pred_region
          %s2534 = ssub.s32 256, 256
          %2535 = vsyncadd [#allocation4], %s2534
          %s2536 = smul.addr %s23, 2
          %s2537 = smul.addr %s2536, 128
          %s2538 = scalar_lea.hbm %s4, %s2537
          %s2540 = sshll.u32 [#allocation5], 4
          %s2541 = int_to_ptr.vmem [resolvable:$true] %s2540
          %2543 = dma.vmem_to_hbm [thread:$0]  %s2541, 256, %s2538, [#allocation4]
        $region52: #{tpu_custom_call.1} parent=35 // pred_fallthru
          _
        // Predicated region
        $region53: #{tpu_custom_call.1} parent=35 // pred_check
          %p2544 = pneg %p153
        $region54: #{tpu_custom_call.1} parent=35 // pred_check_branch
          %2546 = sbr.rel (%p2544) target = $region56
        $region55: #{tpu_custom_call.1} parent=35 // pred_region
          %2547 = dma.done [#allocation4], 256
        $region56: #{tpu_custom_call.1} parent=35 // pred_fallthru
          _
      $region36: #{tpu_custom_call.1} parent=5 // pred_fallthru
        _
      %p2548 = scmp.le.s32.totalorder 2, %s14
      // Predicated region
      $region57: #{tpu_custom_call.1} parent=5 // pred_check
        %p2549 = pneg %p2548
      $region58: #{tpu_custom_call.1} parent=5 // pred_check_branch
        %2551 = sbr.rel (%p2549) target = $region60
      $region59: #{tpu_custom_call.1} parent=5 // pred_region
        %s2552 = ssub.s32 %s14, 2
      $region60: #{tpu_custom_call.1} parent=5 // pred_fallthru
        _
    $region6: #{tpu_custom_call.1} parent=1 // loop_footer
      %s18 = sadd.s32 1, %s14
    $region7: #{tpu_custom_call.1} parent=1 // loop_footer_branch
      %13 = sbr.rel target = $region3
    $region8: #{tpu_custom_call.1} parent=1 // loop_exit
      _
    %2553 = vsyncpa [#allocation3], 1
    %s2554 = scalar_lea.sflag [#allocation3], 1
    %2555 = vsyncpa %s2554, 1
    %2556 = vsyncpa [#allocation4], 1
    %s2557 = scalar_lea.sflag [#allocation4], 1
    %2558 = vsyncpa %s2557, 1

</llo_original>
